<compile_context>
chip_gen: v7x
topology: tpu7x:2x2x1
jax: 0.10.0
libtpu: 0.0.40
codegen_flags: <defaults>
</compile_context>

<pallas_src>
import jax
import jax.numpy as jnp
from jax.experimental import pallas as pl
from jax.experimental.pallas import tpu as pltpu

# ---- hyper-parameters (match STBlock.__init__ args) ----
KERNEL = 2        # temporal conv taps
DILATION = 1      # temporal dilation d
K_DIFF = 2        # diffusion steps K
FEATURE_DIM = 32  # feature_dim (channels)

B, T, N, C = 2, 8, 16, FEATURE_DIM
ROWS_B = T * N            # rows per batch / per grid step
LN_EPS = 1e-5


def stblock_kernel(h_ref, a_ref, wtw_ref, wsw_ref, p_ref, o_ref, ah_ref):
    """One grid step = one batch: (T*N, C) rows ordered (t, n)."""
    h = h_ref[...]                              # (T*N, C) f32
    a = a_ref[...]                              # (N, N)
    p = p_ref[...]                              # (4, C): [bt, bs, gamma, beta]
    bt, bs = p[0:1, :], p[1:2, :]
    gamma, beta = p[2:3, :], p[3:4, :]

    row = jax.lax.broadcasted_iota(jnp.int32, (ROWS_B, 1), 0)

    # ---------------- temporal dilated causal conv (DCN) ----------------
    # One wide MXU push V = h @ [Wt_0 | ... | Wt_{K-1}].  Tap j's term equals a
    # sublane roll (+ causal row mask) of V[:, j*C:(j+1)*C] because row shifts and
    # row masks commute with the channel matmul -> no extra MXU work per tap.
    v = jnp.dot(h, wtw_ref[...], preferred_element_type=jnp.float32)   # (T*N, KERNEL*C)
    h_temp = v[:, 0:C]
    for j in range(1, KERNEL):
        shift = j * DILATION * N
        if shift >= ROWS_B:
            continue                                   # tap entirely out of range
        rolled = pltpu.roll(v[:, j * C:(j + 1) * C], shift, 0)
        h_temp = h_temp + jnp.where(row < shift, 0.0, rolled)
    h_temp = h_temp + bt                                # (T*N, C)

    # ---------------- graph diffusion conv (DiffConv) ----------------
    # One wide push U = h_temp @ [Ws_0 | ... | Ws_{K-1}], then Horner over the node
    # operator: out = U_0 + A (U_1 + A (U_2 + ...)).  A is applied per timestep with
    # small 2D dots -- no block-diagonal I (x) A operator, no quadratic memory.
    u = jnp.dot(h_temp, wsw_ref[...], preferred_element_type=jnp.float32)  # (T*N, K_DIFF*C)
    acc = u[:, (K_DIFF - 1) * C:K_DIFF * C]
    for k in range(K_DIFF - 2, -1, -1):
        for t in range(T):
            ah_ref[t * N:(t + 1) * N, :] = jnp.dot(
                a, acc[t * N:(t + 1) * N, :], preferred_element_type=jnp.float32)
        acc = u[:, k * C:(k + 1) * C] + ah_ref[...]
    h_spt = acc + bs                                    # (T*N, C)

    # ---------------- residual + LayerNorm over channel dim ----------------
    y = h_spt + h
    mean = jnp.mean(y, axis=-1, keepdims=True)
    var = jnp.mean((y - mean) ** 2, axis=-1, keepdims=True)
    yn = (y - mean) * jax.lax.rsqrt(var + LN_EPS)
    o_ref[...] = (yn * gamma + beta).astype(o_ref.dtype)


@jax.jit
def stblock_pallas(H, A, Wt, bt, Ws, bs, gamma, beta):
    # Trace-time layout plumbing only (no compute moved out of the kernel):
    Hf = H.reshape(B * T * N, C)                                   # contiguous view
    wt_wide = jnp.transpose(Wt, (1, 0, 2)).reshape(C, KERNEL * C)  # [Wt_0 | Wt_1 | ...]
    ws_wide = jnp.transpose(Ws, (1, 0, 2)).reshape(C, K_DIFF * C)  # [Ws_0 | Ws_1 | ...]
    params = jnp.concatenate([bt, bs, gamma, beta], axis=0)        # (4, C)

    out = pl.pallas_call(
        stblock_kernel,
        out_shape=jax.ShapeDtypeStruct((B * T * N, C), jnp.float32),
        grid=(B,),
        in_specs=[
            pl.BlockSpec((ROWS_B, C), lambda b: (b, 0)),           # per-batch H rows
            pl.BlockSpec((N, N), lambda b: (0, 0)),                # A (16x16)
            pl.BlockSpec((C, KERNEL * C), lambda b: (0, 0)),       # lane-stacked Wt
            pl.BlockSpec((C, K_DIFF * C), lambda b: (0, 0)),       # lane-stacked Ws
            pl.BlockSpec((4, C), lambda b: (0, 0)),                # [bt, bs, gamma, beta]
        ],
        out_specs=pl.BlockSpec((ROWS_B, C), lambda b: (b, 0)),
        scratch_shapes=[pltpu.VMEM((ROWS_B, C), jnp.float32)],     # A-propagation buffer
        compiler_params=pltpu.CompilerParams(
            dimension_semantics=("parallel",)),
    )(Hf, A, wt_wide, ws_wide, params)
    return out.reshape(B, T, N, C)


def stblock_ref(H, A, Wt, bt, Ws, bs, gamma, beta):
    """Pure-JAX reference with identical semantics (for validation)."""
    # temporal dilated causal conv
    h_temp = jnp.zeros_like(H)
    for j in range(KERNEL):
        shift = j * DILATION
        if shift == 0:
            hs = H
        else:
            hs = jnp.concatenate(
                [jnp.zeros((B, shift, N, C), H.dtype), H[:, : T - shift]], axis=1)
        h_temp = h_temp + jnp.einsum("btnc,cd->btnd", hs, Wt[j])
    h_temp = h_temp + bt[0]
    # diffusion conv
    h_spt = jnp.zeros_like(H)
    xk = h_temp
    for k in range(K_DIFF):
        if k > 0:
            xk = jnp.einsum("mn,btnc->btmc", A, xk)
        h_spt = h_spt + jnp.einsum("btnc,cd->btnd", xk, Ws[k])
    h_spt = h_spt + bs[0]
    # residual + layernorm
    y = h_spt + H
    mean = jnp.mean(y, axis=-1, keepdims=True)
    var = jnp.mean((y - mean) ** 2, axis=-1, keepdims=True)
    return (y - mean) / jnp.sqrt(var + LN_EPS) * gamma[0] + beta[0]


if __name__ == "__main__":
    key = jax.random.PRNGKey(0)
    k_h, k_a, k_wt, k_bt, k_ws, k_bs = jax.random.split(key, 6)

    H = jax.random.normal(k_h, (B, T, N, C), jnp.float32)
    A = jax.random.uniform(k_a, (N, N), jnp.float32) / N  # synthetic adjacency
    Wt = jax.random.normal(k_wt, (KERNEL, C, C), jnp.float32) * 0.1
    bt = jax.random.normal(k_bt, (1, C), jnp.float32) * 0.1
    Ws = jax.random.normal(k_ws, (K_DIFF, C, C), jnp.float32) * 0.1
    bs = jax.random.normal(k_bs, (1, C), jnp.float32) * 0.1
    gamma = jnp.ones((1, C), jnp.float32)
    beta = jnp.zeros((1, C), jnp.float32)

    out = stblock_pallas(H, A, Wt, bt, Ws, bs, gamma, beta)
    out = jax.block_until_ready(out)

    ref = stblock_ref(H, A, Wt, bt, Ws, bs, gamma, beta)
    assert out.shape == (B, T, N, C)
    assert jnp.allclose(out, ref, atol=1e-4, rtol=1e-4), "mismatch vs JAX reference"

    print("KERNEL_OK")
</pallas_src>

<mosaic_0001>
module attributes {stable_mosaic.version = 11 : i64} {
  func.func @stblock_kernel(%arg0: i32, %arg1: memref<128x32xf32, #tpu.memory_space<vmem>>, %arg2: memref<16x16xf32, #tpu.memory_space<vmem>>, %arg3: memref<32x64xf32, #tpu.memory_space<vmem>>, %arg4: memref<32x64xf32, #tpu.memory_space<vmem>>, %arg5: memref<4x32xf32, #tpu.memory_space<vmem>>, %arg6: memref<128x32xf32, #tpu.memory_space<vmem>>, %arg7: memref<128x32xf32, #tpu.memory_space<vmem>>) attributes {dimension_semantics = [#tpu.dimension_semantics<parallel>], iteration_bounds = array<i64: 2>, scalar_prefetch = 0 : i64, scratch_operands = 1 : i64, tpu.core_type = #tpu.core_type<tc>, window_params = [{transform_indices = @transform_0, window_bounds = array<i64: 128, 32>}, {pipeline_mode = #tpu.pipeline_mode<synchronous>, transform_indices = @transform_1, window_bounds = array<i64: 16, 16>}, {pipeline_mode = #tpu.pipeline_mode<synchronous>, transform_indices = @transform_2, window_bounds = array<i64: 32, 64>}, {pipeline_mode = #tpu.pipeline_mode<synchronous>, transform_indices = @transform_3, window_bounds = array<i64: 32, 64>}, {pipeline_mode = #tpu.pipeline_mode<synchronous>, transform_indices = @transform_4, window_bounds = array<i64: 4, 32>}, {transform_indices = @transform_5, window_bounds = array<i64: 128, 32>}]} {
    %c0 = arith.constant 0 : index
    %c0_0 = arith.constant 0 : index
    %0 = vector.load %arg1[%c0, %c0_0] : memref<128x32xf32, #tpu.memory_space<vmem>>, vector<128x32xf32>
    %c0_1 = arith.constant 0 : index
    %c0_2 = arith.constant 0 : index
    %1 = vector.load %arg2[%c0_1, %c0_2] : memref<16x16xf32, #tpu.memory_space<vmem>>, vector<16x16xf32>
    %c0_3 = arith.constant 0 : index
    %c0_4 = arith.constant 0 : index
    %2 = vector.load %arg5[%c0_3, %c0_4] : memref<4x32xf32, #tpu.memory_space<vmem>>, vector<4x32xf32>
    %3 = vector.extract_strided_slice %2 {offsets = [0, 0], sizes = [1, 32], strides = [1, 1]} : vector<4x32xf32> to vector<1x32xf32>
    %4 = vector.extract_strided_slice %2 {offsets = [1, 0], sizes = [1, 32], strides = [1, 1]} : vector<4x32xf32> to vector<1x32xf32>
    %5 = vector.extract_strided_slice %2 {offsets = [2, 0], sizes = [1, 32], strides = [1, 1]} : vector<4x32xf32> to vector<1x32xf32>
    %6 = vector.extract_strided_slice %2 {offsets = [3, 0], sizes = [1, 32], strides = [1, 1]} : vector<4x32xf32> to vector<1x32xf32>
    %7 = tpu.iota {dimensions = array<i32: 0>} : vector<128x1xi32>
    %c0_5 = arith.constant 0 : index
    %c0_6 = arith.constant 0 : index
    %8 = vector.load %arg3[%c0_5, %c0_6] : memref<32x64xf32, #tpu.memory_space<vmem>>, vector<32x64xf32>
    %cst = arith.constant dense<0.000000e+00> : vector<128x64xf32>
    %9 = tpu.matmul %0, %8, %cst {dimension_numbers = #tpu.dot_dimension_numbers<[1], [0], [0], [1], [0, 0, 1, 1], [], []>} : vector<128x32xf32>, vector<32x64xf32>, vector<128x64xf32> -> vector<128x64xf32>
    %10 = vector.extract_strided_slice %9 {offsets = [0, 0], sizes = [128, 32], strides = [1, 1]} : vector<128x64xf32> to vector<128x32xf32>
    %11 = vector.extract_strided_slice %9 {offsets = [0, 32], sizes = [128, 32], strides = [1, 1]} : vector<128x64xf32> to vector<128x32xf32>
    %c16_i32 = arith.constant 16 : i32
    %12 = tpu.dynamic_rotate %11 by %c16_i32 dim 0 : vector<128x32xf32>, i32 -> vector<128x32xf32>
    %c16_i32_7 = arith.constant 16 : i32
    %13 = vector.broadcast %c16_i32_7 : i32 to vector<128x1xi32>
    %14 = arith.cmpi slt, %7, %13 : vector<128x1xi32>
    %cst_8 = arith.constant 0.000000e+00 : f32
    %15 = vector.shape_cast %14 : vector<128x1xi1> to vector<128x1xi1>
    %16 = vector.broadcast %15 : vector<128x1xi1> to vector<128x32xi1>
    %17 = vector.broadcast %cst_8 : f32 to vector<128x32xf32>
    %18 = arith.select %16, %17, %12 : vector<128x32xi1>, vector<128x32xf32>
    %19 = arith.addf %10, %18 : vector<128x32xf32>
    %20 = vector.broadcast %3 : vector<1x32xf32> to vector<128x32xf32>
    %21 = arith.addf %19, %20 : vector<128x32xf32>
    %c0_9 = arith.constant 0 : index
    %c0_10 = arith.constant 0 : index
    %22 = vector.load %arg4[%c0_9, %c0_10] : memref<32x64xf32, #tpu.memory_space<vmem>>, vector<32x64xf32>
    %cst_11 = arith.constant dense<0.000000e+00> : vector<128x64xf32>
    %23 = tpu.matmul %21, %22, %cst_11 {dimension_numbers = #tpu.dot_dimension_numbers<[1], [0], [0], [1], [0, 0, 1, 1], [], []>} : vector<128x32xf32>, vector<32x64xf32>, vector<128x64xf32> -> vector<128x64xf32>
    %24 = vector.extract_strided_slice %23 {offsets = [0, 32], sizes = [128, 32], strides = [1, 1]} : vector<128x64xf32> to vector<128x32xf32>
    %25 = vector.extract_strided_slice %24 {offsets = [0, 0], sizes = [16, 32], strides = [1, 1]} : vector<128x32xf32> to vector<16x32xf32>
    %cst_12 = arith.constant dense<0.000000e+00> : vector<16x32xf32>
    %26 = tpu.matmul %1, %25, %cst_12 {dimension_numbers = #tpu.dot_dimension_numbers<[1], [0], [0], [1], [0, 0, 1, 1], [], []>} : vector<16x16xf32>, vector<16x32xf32>, vector<16x32xf32> -> vector<16x32xf32>
    %c0_13 = arith.constant 0 : index
    %c0_14 = arith.constant 0 : index
    %27 = vector.load %arg7[%c0_13, %c0_14] : memref<128x32xf32, #tpu.memory_space<vmem>>, vector<16x32xf32>
    tpu.vector_store %arg7[%c0_13, %c0_14], %26 {strides = array<i32>} : memref<128x32xf32, #tpu.memory_space<vmem>>, vector<16x32xf32>,
    %28 = vector.extract_strided_slice %24 {offsets = [16, 0], sizes = [16, 32], strides = [1, 1]} : vector<128x32xf32> to vector<16x32xf32>
    %cst_15 = arith.constant dense<0.000000e+00> : vector<16x32xf32>
    %29 = tpu.matmul %1, %28, %cst_15 {dimension_numbers = #tpu.dot_dimension_numbers<[1], [0], [0], [1], [0, 0, 1, 1], [], []>} : vector<16x16xf32>, vector<16x32xf32>, vector<16x32xf32> -> vector<16x32xf32>
    %c16 = arith.constant 16 : index
    %c0_16 = arith.constant 0 : index
    %30 = vector.load %arg7[%c16, %c0_16] : memref<128x32xf32, #tpu.memory_space<vmem>>, vector<16x32xf32>
    tpu.vector_store %arg7[%c16, %c0_16], %29 {strides = array<i32>} : memref<128x32xf32, #tpu.memory_space<vmem>>, vector<16x32xf32>,
    %31 = vector.extract_strided_slice %24 {offsets = [32, 0], sizes = [16, 32], strides = [1, 1]} : vector<128x32xf32> to vector<16x32xf32>
    %cst_17 = arith.constant dense<0.000000e+00> : vector<16x32xf32>
    %32 = tpu.matmul %1, %31, %cst_17 {dimension_numbers = #tpu.dot_dimension_numbers<[1], [0], [0], [1], [0, 0, 1, 1], [], []>} : vector<16x16xf32>, vector<16x32xf32>, vector<16x32xf32> -> vector<16x32xf32>
    %c32 = arith.constant 32 : index
    %c0_18 = arith.constant 0 : index
    %33 = vector.load %arg7[%c32, %c0_18] : memref<128x32xf32, #tpu.memory_space<vmem>>, vector<16x32xf32>
    tpu.vector_store %arg7[%c32, %c0_18], %32 {strides = array<i32>} : memref<128x32xf32, #tpu.memory_space<vmem>>, vector<16x32xf32>,
    %34 = vector.extract_strided_slice %24 {offsets = [48, 0], sizes = [16, 32], strides = [1, 1]} : vector<128x32xf32> to vector<16x32xf32>
    %cst_19 = arith.constant dense<0.000000e+00> : vector<16x32xf32>
    %35 = tpu.matmul %1, %34, %cst_19 {dimension_numbers = #tpu.dot_dimension_numbers<[1], [0], [0], [1], [0, 0, 1, 1], [], []>} : vector<16x16xf32>, vector<16x32xf32>, vector<16x32xf32> -> vector<16x32xf32>
    %c48 = arith.constant 48 : index
    %c0_20 = arith.constant 0 : index
    %36 = vector.load %arg7[%c48, %c0_20] : memref<128x32xf32, #tpu.memory_space<vmem>>, vector<16x32xf32>
    tpu.vector_store %arg7[%c48, %c0_20], %35 {strides = array<i32>} : memref<128x32xf32, #tpu.memory_space<vmem>>, vector<16x32xf32>,
    %37 = vector.extract_strided_slice %24 {offsets = [64, 0], sizes = [16, 32], strides = [1, 1]} : vector<128x32xf32> to vector<16x32xf32>
    %cst_21 = arith.constant dense<0.000000e+00> : vector<16x32xf32>
    %38 = tpu.matmul %1, %37, %cst_21 {dimension_numbers = #tpu.dot_dimension_numbers<[1], [0], [0], [1], [0, 0, 1, 1], [], []>} : vector<16x16xf32>, vector<16x32xf32>, vector<16x32xf32> -> vector<16x32xf32>
    %c64 = arith.constant 64 : index
    %c0_22 = arith.constant 0 : index
    %39 = vector.load %arg7[%c64, %c0_22] : memref<128x32xf32, #tpu.memory_space<vmem>>, vector<16x32xf32>
    tpu.vector_store %arg7[%c64, %c0_22], %38 {strides = array<i32>} : memref<128x32xf32, #tpu.memory_space<vmem>>, vector<16x32xf32>,
    %40 = vector.extract_strided_slice %24 {offsets = [80, 0], sizes = [16, 32], strides = [1, 1]} : vector<128x32xf32> to vector<16x32xf32>
    %cst_23 = arith.constant dense<0.000000e+00> : vector<16x32xf32>
    %41 = tpu.matmul %1, %40, %cst_23 {dimension_numbers = #tpu.dot_dimension_numbers<[1], [0], [0], [1], [0, 0, 1, 1], [], []>} : vector<16x16xf32>, vector<16x32xf32>, vector<16x32xf32> -> vector<16x32xf32>
    %c80 = arith.constant 80 : index
    %c0_24 = arith.constant 0 : index
    %42 = vector.load %arg7[%c80, %c0_24] : memref<128x32xf32, #tpu.memory_space<vmem>>, vector<16x32xf32>
    tpu.vector_store %arg7[%c80, %c0_24], %41 {strides = array<i32>} : memref<128x32xf32, #tpu.memory_space<vmem>>, vector<16x32xf32>,
    %43 = vector.extract_strided_slice %24 {offsets = [96, 0], sizes = [16, 32], strides = [1, 1]} : vector<128x32xf32> to vector<16x32xf32>
    %cst_25 = arith.constant dense<0.000000e+00> : vector<16x32xf32>
    %44 = tpu.matmul %1, %43, %cst_25 {dimension_numbers = #tpu.dot_dimension_numbers<[1], [0], [0], [1], [0, 0, 1, 1], [], []>} : vector<16x16xf32>, vector<16x32xf32>, vector<16x32xf32> -> vector<16x32xf32>
    %c96 = arith.constant 96 : index
    %c0_26 = arith.constant 0 : index
    %45 = vector.load %arg7[%c96, %c0_26] : memref<128x32xf32, #tpu.memory_space<vmem>>, vector<16x32xf32>
    tpu.vector_store %arg7[%c96, %c0_26], %44 {strides = array<i32>} : memref<128x32xf32, #tpu.memory_space<vmem>>, vector<16x32xf32>,
    %46 = vector.extract_strided_slice %24 {offsets = [112, 0], sizes = [16, 32], strides = [1, 1]} : vector<128x32xf32> to vector<16x32xf32>
    %cst_27 = arith.constant dense<0.000000e+00> : vector<16x32xf32>
    %47 = tpu.matmul %1, %46, %cst_27 {dimension_numbers = #tpu.dot_dimension_numbers<[1], [0], [0], [1], [0, 0, 1, 1], [], []>} : vector<16x16xf32>, vector<16x32xf32>, vector<16x32xf32> -> vector<16x32xf32>
    %c112 = arith.constant 112 : index
    %c0_28 = arith.constant 0 : index
    %48 = vector.load %arg7[%c112, %c0_28] : memref<128x32xf32, #tpu.memory_space<vmem>>, vector<16x32xf32>
    tpu.vector_store %arg7[%c112, %c0_28], %47 {strides = array<i32>} : memref<128x32xf32, #tpu.memory_space<vmem>>, vector<16x32xf32>,
    %49 = vector.extract_strided_slice %23 {offsets = [0, 0], sizes = [128, 32], strides = [1, 1]} : vector<128x64xf32> to vector<128x32xf32>
    %c0_29 = arith.constant 0 : index
    %c0_30 = arith.constant 0 : index
    %50 = vector.load %arg7[%c0_29, %c0_30] : memref<128x32xf32, #tpu.memory_space<vmem>>, vector<128x32xf32>
    %51 = arith.addf %49, %50 : vector<128x32xf32>
    %52 = vector.broadcast %4 : vector<1x32xf32> to vector<128x32xf32>
    %53 = arith.addf %51, %52 : vector<128x32xf32>
    %54 = arith.addf %53, %0 : vector<128x32xf32>
    %cst_31 = arith.constant dense<0.000000e+00> : vector<128xf32>
    %55 = vector.multi_reduction <add>, %54, %cst_31 [1] : vector<128x32xf32> to vector<128xf32>
    %56 = vector.shape_cast %55 : vector<128xf32> to vector<128x1xf32>
    %cst_32 = arith.constant 3.200000e+01 : f32
    %57 = vector.broadcast %cst_32 : f32 to vector<128x1xf32>
    %58 = arith.divf %56, %57 : vector<128x1xf32>
    %59 = vector.broadcast %58 : vector<128x1xf32> to vector<128x32xf32>
    %60 = arith.subf %54, %59 : vector<128x32xf32>
    %61 = arith.mulf %60, %60 : vector<128x32xf32>
    %cst_33 = arith.constant dense<0.000000e+00> : vector<128xf32>
    %62 = vector.multi_reduction <add>, %61, %cst_33 [1] : vector<128x32xf32> to vector<128xf32>
    %63 = vector.shape_cast %62 : vector<128xf32> to vector<128x1xf32>
    %cst_34 = arith.constant 3.200000e+01 : f32
    %64 = vector.broadcast %cst_34 : f32 to vector<128x1xf32>
    %65 = arith.divf %63, %64 : vector<128x1xf32>
    %66 = vector.broadcast %58 : vector<128x1xf32> to vector<128x32xf32>
    %67 = arith.subf %54, %66 : vector<128x32xf32>
    %cst_35 = arith.constant 9.99999974E-6 : f32
    %68 = vector.broadcast %cst_35 : f32 to vector<128x1xf32>
    %69 = arith.addf %65, %68 : vector<128x1xf32>
    %70 = math.rsqrt %69 : vector<128x1xf32>
    %71 = vector.broadcast %70 : vector<128x1xf32> to vector<128x32xf32>
    %72 = arith.mulf %67, %71 : vector<128x32xf32>
    %73 = vector.broadcast %5 : vector<1x32xf32> to vector<128x32xf32>
    %74 = arith.mulf %72, %73 : vector<128x32xf32>
    %75 = vector.broadcast %6 : vector<1x32xf32> to vector<128x32xf32>
    %76 = arith.addf %74, %75 : vector<128x32xf32>
    %c0_36 = arith.constant 0 : index
    %c0_37 = arith.constant 0 : index
    %77 = vector.load %arg6[%c0_36, %c0_37] : memref<128x32xf32, #tpu.memory_space<vmem>>, vector<128x32xf32>
    tpu.vector_store %arg6[%c0_36, %c0_37], %76 {strides = array<i32>} : memref<128x32xf32, #tpu.memory_space<vmem>>, vector<128x32xf32>,
    return
  }
  func.func @transform_0(%arg0: i32) -> (i32, i32) {
    %c0_i32 = arith.constant 0 : i32
    %c0_i32_0 = arith.constant 0 : i32
    return %arg0, %c0_i32 : i32, i32
  }
  func.func @transform_1(%arg0: i32) -> (i32, i32) {
    %c0_i32 = arith.constant 0 : i32
    %c0_i32_0 = arith.constant 0 : i32
    %c0_i32_1 = arith.constant 0 : i32
    return %c0_i32, %c0_i32_0 : i32, i32
  }
  func.func @transform_2(%arg0: i32) -> (i32, i32) {
    %c0_i32 = arith.constant 0 : i32
    %c0_i32_0 = arith.constant 0 : i32
    %c0_i32_1 = arith.constant 0 : i32
    return %c0_i32, %c0_i32_0 : i32, i32
  }
  func.func @transform_3(%arg0: i32) -> (i32, i32) {
    %c0_i32 = arith.constant 0 : i32
    %c0_i32_0 = arith.constant 0 : i32
    %c0_i32_1 = arith.constant 0 : i32
    return %c0_i32, %c0_i32_0 : i32, i32
  }
  func.func @transform_4(%arg0: i32) -> (i32, i32) {
    %c0_i32 = arith.constant 0 : i32
    %c0_i32_0 = arith.constant 0 : i32
    %c0_i32_1 = arith.constant 0 : i32
    return %c0_i32, %c0_i32_0 : i32, i32
  }
  func.func @transform_5(%arg0: i32) -> (i32, i32) {
    %c0_i32 = arith.constant 0 : i32
    %c0_i32_0 = arith.constant 0 : i32
    return %arg0, %c0_i32 : i32, i32
  }
}

</mosaic_0001>

<llo_original>
// kernel: stblock_pallas.1
$region0: #{stblock_pallas.1}
  #allocation0 [shape = 'u32[]', space=smem, size = 0x4, offset = 0x4, fixed_abs, tag = 'smem constant byte address 0x4 - core index']
  #allocation1 [shape = 'u32[144,128]{1,0:T(1,128)}', space=vmem, size = 0x12000, scoped, tag = 'internal scratch']
  #allocation2 [shape = 'f32[128,32]{1,0:T(8,128)}', space=vmem, size = 0x10000, scoped, tag = 'scratch operand']
  %s0 = inlined_call_operand.vmem [shape: f32[256,32], index: 0, kind: input, shape index: {}]
  %s1 = inlined_call_operand.vmem [shape: f32[16,16], index: 1, kind: input, shape index: {}]
  %s2 = inlined_call_operand.vmem [shape: f32[32,64], index: 2, kind: input, shape index: {}]
  %s3 = inlined_call_operand.vmem [shape: f32[32,64], index: 3, kind: input, shape index: {}]
  %s4 = inlined_call_operand.vmem [shape: f32[4,32], index: 4, kind: input, shape index: {}]
  %s5 = inlined_call_operand.hbm [shape: f32[256,32], index: 5, kind: output, shape index: {}]
  %s6 = sld [smem:[#allocation0]]
  $region53: #{stblock_pallas.1} parent=0
    _
  %s8 = ssub.s32 1, %s6
  %s9 = scalar_select 0, %s8, %s6
  $region1: #{stblock_pallas.1} parent=0
    #allocation3 [shape = 'u8[131072]{0}', space=vmem, size = 0x20000, scoped, tag = 'output window, operand 0']
    #allocation4 [shape = 's32[2]{0}', space=sflag, size = 0x8, scoped, tag = 'scoped memory for stblock_pallas.1']
    %10 = vsyncpa [#allocation4], 0
    %s11 = scalar_lea.sflag [#allocation4], 1
    %12 = vsyncpa %s11, 0
    loop: start=0, step=1, limit=4
    $region2: #{stblock_pallas.1} parent=1 // loop_pre_header
      _
    $region3: #{stblock_pallas.1} parent=1 // loop_header
      %s14 = sphi 0, %s18
      %p15 = scmp.ge.s32.totalorder %s14, 4
      %s24 = sphi 0, %s26
      %s27 = sphi 0, %s24
      %s28 = sphi 0, %s27
      %s44 = sphi 0, %s28
      %s48 = sphi 0, %s48
      %s50 = sphi 0, %s48
      %s51 = sphi 0, %s50
      %s65 = sphi 0, %s51
      %s69 = sphi 0, %s69
      %s71 = sphi 0, %s69
      %s72 = sphi 0, %s71
      %s86 = sphi 0, %s72
      %s90 = sphi 0, %s90
      %s92 = sphi 0, %s90
      %s93 = sphi 0, %s92
      %s107 = sphi 0, %s93
      %s111 = sphi 0, %s111
      %s113 = sphi 0, %s111
      %s114 = sphi 0, %s113
      %s128 = sphi 0, %s114
      %s134 = sphi 0, %s136
      %s137 = sphi 0, %s134
      %s138 = sphi 0, %s137
      %s154 = sphi 0, %s138
    $region4: #{stblock_pallas.1} parent=1 // loop_header_branch
      %17 = sbr.rel (%p15) target = $region8
    $region5: #{stblock_pallas.1} parent=1 // loop_body
      %s19 = ssub.s32 %s14, 1
      %s20 = ssub.s32 %s14, 2
      %s21 = sadd.s32 %s14, 1
      %s22 = ssub.s32 %s14, %s21
      %p23 = scmp.eq.s32.totalorder %s22, 0
      %s25 = sadd.s32 %s24, 1
      %s26 = scalar_select %p23, %s24, %s25
      %p29 = pneg %p23
      %p30 = scmp.eq.s32.totalorder %s14, 1
      %p31 = por %p29, %p30
      %p32 = scmp.ne.s32.totalorder %s24, %s27
      %p33 = scmp.eq.s32.totalorder %s14, 0
      %p34 = por %p32, %p33
      %p35 = scmp.ne.s32.totalorder %s24, %s27
      %p36 = scmp.eq.s32.totalorder %s19, 1
      %p37 = por %p35, %p36
      %p38 = scmp.ne.s32.totalorder %s27, %s28
      %p39 = scmp.eq.s32.totalorder %s19, 0
      %p40 = por %p38, %p39
      %p41 = scmp.ne.s32.totalorder %s27, %s28
      %p42 = scmp.eq.s32.totalorder %s20, 1
      %p43 = por %p41, %p42
      %p45 = scmp.ne.s32.totalorder %s28, %s44
      %p46 = scmp.eq.s32.totalorder %s20, 0
      %p47 = por %p45, %p46
      %s49 = sadd.s32 %s48, 1
      %p52 = scmp.eq.s32.totalorder %s14, 1
      %p53 = scmp.ne.s32.totalorder %s48, %s50
      %p54 = scmp.eq.s32.totalorder %s14, 0
      %p55 = por %p53, %p54
      %p56 = scmp.ne.s32.totalorder %s48, %s50
      %p57 = scmp.eq.s32.totalorder %s19, 1
      %p58 = por %p56, %p57
      %p59 = scmp.ne.s32.totalorder %s50, %s51
      %p60 = scmp.eq.s32.totalorder %s19, 0
      %p61 = por %p59, %p60
      %p62 = scmp.ne.s32.totalorder %s50, %s51
      %p63 = scmp.eq.s32.totalorder %s20, 1
      %p64 = por %p62, %p63
      %p66 = scmp.ne.s32.totalorder %s51, %s65
      %p67 = scmp.eq.s32.totalorder %s20, 0
      %p68 = por %p66, %p67
      %s70 = sadd.s32 %s69, 1
      %p73 = scmp.eq.s32.totalorder %s14, 1
      %p74 = scmp.ne.s32.totalorder %s69, %s71
      %p75 = scmp.eq.s32.totalorder %s14, 0
      %p76 = por %p74, %p75
      %p77 = scmp.ne.s32.totalorder %s69, %s71
      %p78 = scmp.eq.s32.totalorder %s19, 1
      %p79 = por %p77, %p78
      %p80 = scmp.ne.s32.totalorder %s71, %s72
      %p81 = scmp.eq.s32.totalorder %s19, 0
      %p82 = por %p80, %p81
      %p83 = scmp.ne.s32.totalorder %s71, %s72
      %p84 = scmp.eq.s32.totalorder %s20, 1
      %p85 = por %p83, %p84
      %p87 = scmp.ne.s32.totalorder %s72, %s86
      %p88 = scmp.eq.s32.totalorder %s20, 0
      %p89 = por %p87, %p88
      %s91 = sadd.s32 %s90, 1
      %p94 = scmp.eq.s32.totalorder %s14, 1
      %p95 = scmp.ne.s32.totalorder %s90, %s92
      %p96 = scmp.eq.s32.totalorder %s14, 0
      %p97 = por %p95, %p96
      %p98 = scmp.ne.s32.totalorder %s90, %s92
      %p99 = scmp.eq.s32.totalorder %s19, 1
      %p100 = por %p98, %p99
      %p101 = scmp.ne.s32.totalorder %s92, %s93
      %p102 = scmp.eq.s32.totalorder %s19, 0
      %p103 = por %p101, %p102
      %p104 = scmp.ne.s32.totalorder %s92, %s93
      %p105 = scmp.eq.s32.totalorder %s20, 1
      %p106 = por %p104, %p105
      %p108 = scmp.ne.s32.totalorder %s93, %s107
      %p109 = scmp.eq.s32.totalorder %s20, 0
      %p110 = por %p108, %p109
      %s112 = sadd.s32 %s111, 1
      %p115 = scmp.eq.s32.totalorder %s14, 1
      %p116 = scmp.ne.s32.totalorder %s111, %s113
      %p117 = scmp.eq.s32.totalorder %s14, 0
      %p118 = por %p116, %p117
      %p119 = scmp.ne.s32.totalorder %s111, %s113
      %p120 = scmp.eq.s32.totalorder %s19, 1
      %p121 = por %p119, %p120
      %p122 = scmp.ne.s32.totalorder %s113, %s114
      %p123 = scmp.eq.s32.totalorder %s19, 0
      %p124 = por %p122, %p123
      %p125 = scmp.ne.s32.totalorder %s113, %s114
      %p126 = scmp.eq.s32.totalorder %s20, 1
      %p127 = por %p125, %p126
      %p129 = scmp.ne.s32.totalorder %s114, %s128
      %p130 = scmp.eq.s32.totalorder %s20, 0
      %p131 = por %p129, %p130
      %s132 = ssub.s32 %s14, %s21
      %p133 = scmp.eq.s32.totalorder %s132, 0
      %s135 = sadd.s32 %s134, 1
      %s136 = scalar_select %p133, %s134, %s135
      %p139 = pneg %p133
      %p140 = scmp.eq.s32.totalorder %s14, 1
      %p141 = por %p139, %p140
      %p142 = scmp.ne.s32.totalorder %s134, %s137
      %p143 = scmp.eq.s32.totalorder %s14, 0
      %p144 = por %p142, %p143
      %p145 = scmp.ne.s32.totalorder %s134, %s137
      %p146 = scmp.eq.s32.totalorder %s19, 1
      %p147 = por %p145, %p146
      %p148 = scmp.ne.s32.totalorder %s137, %s138
      %p149 = scmp.eq.s32.totalorder %s19, 0
      %p150 = por %p148, %p149
      %p151 = scmp.ne.s32.totalorder %s137, %s138
      %p152 = scmp.eq.s32.totalorder %s20, 1
      %p153 = por %p151, %p152
      %p155 = scmp.ne.s32.totalorder %s138, %s154
      %p156 = scmp.eq.s32.totalorder %s20, 0
      %p157 = por %p155, %p156
      %p158 = scmp.le.s32.totalorder 1, %s14
      %p159 = scmp.lt.s32.totalorder %s14, 3
      %p160 = pnand %p158, %p159
      %p161 = pneg %p160
      // Predicated region
      $region9: #{stblock_pallas.1} parent=5 // pred_check
        _
      $region10: #{stblock_pallas.1} parent=5 // pred_check_branch
        %163 = sbr.rel (%p160) target = $region12
      $region11: #{stblock_pallas.1} parent=5 // pred_region
        %s164 = ssub.s32 %s14, 1
        // Predicated region
        $region13: #{stblock_pallas.1} parent=11 // pred_check
          %p165 = pneg %p61
        $region14: #{stblock_pallas.1} parent=11 // pred_check_branch
          %167 = sbr.rel (%p165) target = $region16
        $region15: #{stblock_pallas.1} parent=11 // pred_region
          _
        $region16: #{stblock_pallas.1} parent=11 // pred_fallthru
          _
        // Predicated region
        $region17: #{stblock_pallas.1} parent=11 // pred_check
          %p168 = pneg %p82
        $region18: #{stblock_pallas.1} parent=11 // pred_check_branch
          %170 = sbr.rel (%p168) target = $region20
        $region19: #{stblock_pallas.1} parent=11 // pred_region
          _
        $region20: #{stblock_pallas.1} parent=11 // pred_fallthru
          _
        // Predicated region
        $region21: #{stblock_pallas.1} parent=11 // pred_check
          %p171 = pneg %p103
        $region22: #{stblock_pallas.1} parent=11 // pred_check_branch
          %173 = sbr.rel (%p171) target = $region24
        $region23: #{stblock_pallas.1} parent=11 // pred_region
          _
        $region24: #{stblock_pallas.1} parent=11 // pred_fallthru
          _
        // Predicated region
        $region25: #{stblock_pallas.1} parent=11 // pred_check
          %p174 = pneg %p124
        $region26: #{stblock_pallas.1} parent=11 // pred_check_branch
          %176 = sbr.rel (%p174) target = $region28
        $region27: #{stblock_pallas.1} parent=11 // pred_region
          _
        $region28: #{stblock_pallas.1} parent=11 // pred_fallthru
          _
      $region12: #{stblock_pallas.1} parent=5 // pred_fallthru
        _
      %p177 = scmp.lt.s32.totalorder %s14, 2
      // Predicated region
      $region29: #{stblock_pallas.1} parent=5 // pred_check
        %p178 = pneg %p177
      $region30: #{stblock_pallas.1} parent=5 // pred_check_branch
        %180 = sbr.rel (%p178) target = $region32
      $region31: #{stblock_pallas.1} parent=5 // pred_region
        // Predicated region
        $region33: #{stblock_pallas.1} parent=31 // pred_check
          %p181 = pneg %p34
        $region34: #{stblock_pallas.1} parent=31 // pred_check_branch
          %183 = sbr.rel (%p181) target = $region36
        $region35: #{stblock_pallas.1} parent=31 // pred_region
          %s184 = smul.u32 16, %s14
          %p185 = scmp.lt.s32.totalorder %s184, 31
          %s186 = scalar_select %p185, %s184, 31
          %s187 = smul.addr %s186, 8
          %s188 = scalar_lea.vmem %s0, %s187
          %s189 = smul.u32 16, %s14
        $region36: #{stblock_pallas.1} parent=31 // pred_fallthru
          _
      $region32: #{stblock_pallas.1} parent=5 // pred_fallthru
        _
      %p190 = scmp.le.s32.totalorder 1, %s14
      %p191 = scmp.lt.s32.totalorder %s14, 3
      %p192 = pnand %p190, %p191
      %p193 = pneg %p192
      // Predicated region
      $region37: #{stblock_pallas.1} parent=5 // pred_check
        _
      $region38: #{stblock_pallas.1} parent=5 // pred_check_branch
        %195 = sbr.rel (%p192) target = $region40
      $region39: #{stblock_pallas.1} parent=5 // pred_region
        %s196 = ssub.s32 %s14, 1
        %s197 = smul.u32 16, %s19
        %p198 = scmp.lt.s32.totalorder %s197, 31
        %s199 = scalar_select %p198, %s197, 31
        %s200 = smul.addr %s199, 8
        %s201 = scalar_lea.vmem %s0, %s200
        %p202 = pneg %p40
        %p203 = pneg %p37
        %p204 = pneg %p61
        %p205 = pneg %p58
        %p206 = pneg %p82
        %p207 = pneg %p79
        %p208 = pneg %p103
        %p209 = pneg %p100
        %p210 = pneg %p124
        %p211 = pneg %p121
        %p212 = pneg %p150
        %p213 = pneg %p147
        %s214 = sand.u32 %s137, 1
        %s215 = scalar_lea.sflag [#allocation4], %s214
        %s216 = sand.u32 %s137, 1
        %s217 = smul.addr %s216, 128
        %s218 = scalar_lea.vmem [#allocation3], %s217
        %s219 = smul.u32 16, %s19
        %p220 = scmp.lt.s32.totalorder %s219, 31
        %s221 = scalar_select %p220, %s219, 31
        %s222 = smul.addr %s221, 8
        %s223 = scalar_lea.vmem %s0, %s222
        %s224 = smul.u32 16, %s19
        %s225 = smul.u32 16, %s19
        %v226 = vld [vmem:[%s223] sm:$0xff]
        %v227 = vld [vmem:[%s223 + $0x8] sm:$0xff]
        %v228 = vld [vmem:[%s223 + $0x10] sm:$0xff]
        %v229 = vld [vmem:[%s223 + $0x18] sm:$0xff]
        %v230 = vld [vmem:[%s223 + $0x20] sm:$0xff]
        %v231 = vld [vmem:[%s223 + $0x28] sm:$0xff]
        %v232 = vld [vmem:[%s223 + $0x30] sm:$0xff]
        %v233 = vld [vmem:[%s223 + $0x38] sm:$0xff]
        %v234 = vld [vmem:[%s223 + $0x40] sm:$0xff]
        %v235 = vld [vmem:[%s223 + $0x48] sm:$0xff]
        %v236 = vld [vmem:[%s223 + $0x50] sm:$0xff]
        %v237 = vld [vmem:[%s223 + $0x58] sm:$0xff]
        %v238 = vld [vmem:[%s223 + $0x60] sm:$0xff]
        %v239 = vld [vmem:[%s223 + $0x68] sm:$0xff]
        %v240 = vld [vmem:[%s223 + $0x70] sm:$0xff]
        %v241 = vld [vmem:[%s223 + $0x78] sm:$0xff]
        %v242 = vld [vmem:[%s1] sm:$0xff]
        %v243 = vld [vmem:[%s1 + $0x8] sm:$0xff]
        %v244 = vld [vmem:[%s4] sm:$0xf]
        %v245 = vlaneseq
        %v246 = vshrl.u32 %v245, 7
        %v247 = vadd.s32 %v246, 8
        %v248 = vadd.s32 %v246, 16
        %v249 = vadd.s32 %v246, 24
        %v250 = vadd.s32 %v246, 32
        %v251 = vadd.s32 %v246, 40
        %v252 = vadd.s32 %v246, 48
        %v253 = vadd.s32 %v246, 56
        %v254 = vadd.s32 %v246, 64
        %v255 = vadd.s32 %v246, 72
        %v256 = vadd.s32 %v246, 80
        %v257 = vadd.s32 %v246, 88
        %v258 = vadd.s32 %v246, 96
        %v259 = vadd.s32 %v246, 104
        %v260 = vadd.s32 %v246, 112
        %v261 = vadd.s32 %v246, 120
        %v262 = vld [vmem:[%s2] sm:$0xff]
        %v263 = vld [vmem:[%s2 + $0x8] sm:$0xff]
        %v264 = vld [vmem:[%s2 + $0x10] sm:$0xff]
        %v265 = vld [vmem:[%s2 + $0x18] sm:$0xff]
        %vm266 = vcmask 261120
        %v268 = vsel %vm266, %v226, 0
        %v271 = vsel %vm266, %v227, 0
        %v274 = vsel %vm266, %v228, 0
        %v277 = vsel %vm266, %v229, 0
        %v280 = vsel %vm266, %v230, 0
        %v283 = vsel %vm266, %v231, 0
        %v286 = vsel %vm266, %v232, 0
        %v289 = vsel %vm266, %v233, 0
        %v292 = vsel %vm266, %v234, 0
        %v295 = vsel %vm266, %v235, 0
        %v298 = vsel %vm266, %v236, 0
        %v301 = vsel %vm266, %v237, 0
        %v304 = vsel %vm266, %v238, 0
        %v307 = vsel %vm266, %v239, 0
        %v310 = vsel %vm266, %v240, 0
        %v313 = vsel %vm266, %v241, 0
        %315 = vmatprep.subr.mxu0 0.0
        %316 = vmatpush1.msra.mxu0 %v262
        %317 = vmatprep.subr.mxu0 0.0
        %318 = vmatpush1.msra.mxu0 %v263
        %319 = vmatprep.subr.mxu0 0.0
        %320 = vmatpush1.msra.mxu0 %v264
        %321 = vmatprep.subr.mxu0 0.0
        %322 = vmatpush1.msra.mxu0 %v265
        %323 = vmatprep.subr.mxu0 0.0
        %324 = vmatpush1.msra.mxu0 0.0
        %325 = vmatprep.subr.mxu0 0.0
        %326 = vmatpush1.msra.mxu0 0.0
        %327 = vmatprep.subr.mxu0 0.0
        %328 = vmatpush1.msra.mxu0 0.0
        %329 = vmatprep.subr.mxu0 0.0
        %330 = vmatpush1.msra.mxu0 0.0
        %331 = vmatprep.subr.mxu0 0.0
        %332 = vmatpush1.msra.mxu0 0.0
        %333 = vmatprep.subr.mxu0 0.0
        %334 = vmatpush1.msra.mxu0 0.0
        %335 = vmatprep.subr.mxu0 0.0
        %336 = vmatpush1.msra.mxu0 0.0
        %337 = vmatprep.subr.mxu0 0.0
        %338 = vmatpush1.msra.mxu0 0.0
        %339 = vmatprep.subr.mxu0 0.0
        %340 = vmatpush1.msra.mxu0 0.0
        %341 = vmatprep.subr.mxu0 0.0
        %342 = vmatpush1.msra.mxu0 0.0
        %343 = vmatprep.subr.mxu0 0.0
        %344 = vmatpush1.msra.mxu0 0.0
        %345 = vmatprep.subr.mxu0 0.0
        %346 = vmatpush1.msra.mxu0 0.0
        %347 = vmatprep.subr.mxu0 0.0
        %348 = vmatpush1.msra.mxu0 0.0
        %349 = vmatprep.subr.mxu0 0.0
        %350 = vmatpush1.msra.mxu0 0.0
        %351 = vmatprep.subr.mxu0 0.0
        %352 = vmatpush1.msra.mxu0 0.0
        %353 = vmatprep.subr.mxu0 0.0
        %354 = vmatpush1.msra.mxu0 0.0
        %355 = vmatprep.subr.mxu0 0.0
        %356 = vmatpush1.msra.mxu0 0.0
        %357 = vmatprep.subr.mxu0 0.0
        %358 = vmatpush1.msra.mxu0 0.0
        %359 = vmatprep.subr.mxu0 0.0
        %360 = vmatpush1.msra.mxu0 0.0
        %361 = vmatprep.subr.mxu0 0.0
        %362 = vmatpush1.msra.mxu0 0.0
        %363 = vmatprep.subr.mxu0 0.0
        %364 = vmatpush1.msra.mxu0 0.0
        %365 = vmatprep.subr.mxu0 0.0
        %366 = vmatpush1.msra.mxu0 0.0
        %367 = vmatprep.subr.mxu0 0.0
        %368 = vmatpush1.msra.mxu0 0.0
        %369 = vmatprep.subr.mxu0 0.0
        %370 = vmatpush1.msra.mxu0 0.0
        %371 = vmatprep.subr.mxu0 0.0
        %372 = vmatpush1.msra.mxu0 0.0
        %373 = vmatprep.subr.mxu0 0.0
        %374 = vmatpush1.msra.mxu0 0.0
        %375 = vmatprep.subr.mxu0 0.0
        %376 = vmatpush1.msra.mxu0 0.0
        %377 = vmatprep.subr.mxu0 0.0
        %378 = vmatpush1.msra.mxu0 0.0
        %379 = vmatprep.mubr.f32.mxu0 0.0
        %380 = vmatmul.mubr.f32.gmra.mrb[0].mxu0 %v268
        %v381 = vpop.f32.mrb[0].mxu0
        %v382 = vadd.f32 0.0, %v381
        %v383 = vpop.f32.mrb[0].mxu0
        %384 = vmatprep.mubr.f32.mxu0 0.0
        %385 = vmatmul.mubr.f32.gmra.mrb[0].mxu0 %v271
        %v386 = vpop.f32.mrb[0].mxu0
        %v387 = vadd.f32 0.0, %v386
        %v388 = vpop.f32.mrb[0].mxu0
        %389 = vmatprep.mubr.f32.mxu0 0.0
        %390 = vmatmul.mubr.f32.gmra.mrb[0].mxu0 %v274
        %v391 = vpop.f32.mrb[0].mxu0
        %v392 = vadd.f32 0.0, %v391
        %v393 = vpop.f32.mrb[0].mxu0
        %394 = vmatprep.mubr.f32.mxu0 0.0
        %395 = vmatmul.mubr.f32.gmra.mrb[0].mxu0 %v277
        %v396 = vpop.f32.mrb[0].mxu0
        %v397 = vadd.f32 0.0, %v396
        %v398 = vpop.f32.mrb[0].mxu0
        %399 = vmatprep.mubr.f32.mxu0 0.0
        %400 = vmatmul.mubr.f32.gmra.mrb[0].mxu0 %v280
        %v401 = vpop.f32.mrb[0].mxu0
        %v402 = vadd.f32 0.0, %v401
        %v403 = vpop.f32.mrb[0].mxu0
        %404 = vmatprep.mubr.f32.mxu0 0.0
        %405 = vmatmul.mubr.f32.gmra.mrb[0].mxu0 %v283
        %v406 = vpop.f32.mrb[0].mxu0
        %v407 = vadd.f32 0.0, %v406
        %v408 = vpop.f32.mrb[0].mxu0
        %409 = vmatprep.mubr.f32.mxu0 0.0
        %410 = vmatmul.mubr.f32.gmra.mrb[0].mxu0 %v286
        %v411 = vpop.f32.mrb[0].mxu0
        %v412 = vadd.f32 0.0, %v411
        %v413 = vpop.f32.mrb[0].mxu0
        %414 = vmatprep.mubr.f32.mxu0 0.0
        %415 = vmatmul.mubr.f32.gmra.mrb[0].mxu0 %v289
        %v416 = vpop.f32.mrb[0].mxu0
        %v417 = vadd.f32 0.0, %v416
        %v418 = vpop.f32.mrb[0].mxu0
        %419 = vmatprep.mubr.f32.mxu0 0.0
        %420 = vmatmul.mubr.f32.gmra.mrb[0].mxu0 %v292
        %v421 = vpop.f32.mrb[0].mxu0
        %v422 = vadd.f32 0.0, %v421
        %v423 = vpop.f32.mrb[0].mxu0
        %424 = vmatprep.mubr.f32.mxu0 0.0
        %425 = vmatmul.mubr.f32.gmra.mrb[0].mxu0 %v295
        %v426 = vpop.f32.mrb[0].mxu0
        %v427 = vadd.f32 0.0, %v426
        %v428 = vpop.f32.mrb[0].mxu0
        %429 = vmatprep.mubr.f32.mxu0 0.0
        %430 = vmatmul.mubr.f32.gmra.mrb[0].mxu0 %v298
        %v431 = vpop.f32.mrb[0].mxu0
        %v432 = vadd.f32 0.0, %v431
        %v433 = vpop.f32.mrb[0].mxu0
        %434 = vmatprep.mubr.f32.mxu0 0.0
        %435 = vmatmul.mubr.f32.gmra.mrb[0].mxu0 %v301
        %v436 = vpop.f32.mrb[0].mxu0
        %v437 = vadd.f32 0.0, %v436
        %v438 = vpop.f32.mrb[0].mxu0
        %439 = vmatprep.mubr.f32.mxu0 0.0
        %440 = vmatmul.mubr.f32.gmra.mrb[0].mxu0 %v304
        %v441 = vpop.f32.mrb[0].mxu0
        %v442 = vadd.f32 0.0, %v441
        %v443 = vpop.f32.mrb[0].mxu0
        %444 = vmatprep.mubr.f32.mxu0 0.0
        %445 = vmatmul.mubr.f32.gmra.mrb[0].mxu0 %v307
        %v446 = vpop.f32.mrb[0].mxu0
        %v447 = vadd.f32 0.0, %v446
        %v448 = vpop.f32.mrb[0].mxu0
        %449 = vmatprep.mubr.f32.mxu0 0.0
        %450 = vmatmul.mubr.f32.gmra.mrb[0].mxu0 %v310
        %v451 = vpop.f32.mrb[0].mxu0
        %v452 = vadd.f32 0.0, %v451
        %v453 = vpop.f32.mrb[0].mxu0
        %454 = vmatprep.mubr.f32.mxu0 0.0
        %455 = vmatmul.mubr.f32.gmra.mrb[0].mxu0 %v313
        %v456 = vpop.f32.mrb[0].mxu0
        %v457 = vadd.f32 0.0, %v456
        %v458 = vpop.f32.mrb[0].mxu0
        %459 = vdwg.mxu0
        %476 = vrot.lane.b32.xlu0 %v382, 96
        %v477 = vpop.permute.xlu0 %476
        %478 = vrot.lane.b32.xlu0 %v387, 96
        %v479 = vpop.permute.xlu0 %478
        %480 = vrot.lane.b32.xlu0 %v392, 96
        %v481 = vpop.permute.xlu0 %480
        %482 = vrot.lane.b32.xlu0 %v397, 96
        %v483 = vpop.permute.xlu0 %482
        %484 = vrot.lane.b32.xlu0 %v402, 96
        %v485 = vpop.permute.xlu0 %484
        %486 = vrot.lane.b32.xlu0 %v407, 96
        %v487 = vpop.permute.xlu0 %486
        %488 = vrot.lane.b32.xlu0 %v412, 96
        %v489 = vpop.permute.xlu0 %488
        %490 = vrot.lane.b32.xlu0 %v417, 96
        %v491 = vpop.permute.xlu0 %490
        %492 = vrot.lane.b32.xlu0 %v422, 96
        %v493 = vpop.permute.xlu0 %492
        %494 = vrot.lane.b32.xlu0 %v427, 96
        %v495 = vpop.permute.xlu0 %494
        %496 = vrot.lane.b32.xlu0 %v432, 96
        %v497 = vpop.permute.xlu0 %496
        %498 = vrot.lane.b32.xlu0 %v437, 96
        %v499 = vpop.permute.xlu0 %498
        %500 = vrot.lane.b32.xlu0 %v442, 96
        %v501 = vpop.permute.xlu0 %500
        %502 = vrot.lane.b32.xlu0 %v447, 96
        %v503 = vpop.permute.xlu0 %502
        %504 = vrot.lane.b32.xlu0 %v452, 96
        %v505 = vpop.permute.xlu0 %504
        %506 = vrot.lane.b32.xlu0 %v457, 96
        %v507 = vpop.permute.xlu0 %506
        %vm524 = vcmp.lt.s32.totalorder %v246, 16
        %vm525 = vcmp.lt.s32.totalorder %v247, 16
        %vm526 = vcmp.lt.s32.totalorder %v248, 16
        %vm527 = vcmp.lt.s32.totalorder %v249, 16
        %vm528 = vcmp.lt.s32.totalorder %v250, 16
        %vm529 = vcmp.lt.s32.totalorder %v251, 16
        %vm530 = vcmp.lt.s32.totalorder %v252, 16
        %vm531 = vcmp.lt.s32.totalorder %v253, 16
        %vm532 = vcmp.lt.s32.totalorder %v254, 16
        %vm533 = vcmp.lt.s32.totalorder %v255, 16
        %vm534 = vcmp.lt.s32.totalorder %v256, 16
        %vm535 = vcmp.lt.s32.totalorder %v257, 16
        %vm536 = vcmp.lt.s32.totalorder %v258, 16
        %vm537 = vcmp.lt.s32.totalorder %v259, 16
        %vm538 = vcmp.lt.s32.totalorder %v260, 16
        %vm539 = vcmp.lt.s32.totalorder %v261, 16
        %v540 = vsel %vm524, 1, 0
        %v541 = vsel %vm525, 1, 0
        %v542 = vsel %vm526, 1, 0
        %v543 = vsel %vm527, 1, 0
        %v544 = vsel %vm528, 1, 0
        %v545 = vsel %vm529, 1, 0
        %v546 = vsel %vm530, 1, 0
        %v547 = vsel %vm531, 1, 0
        %v548 = vsel %vm532, 1, 0
        %v549 = vsel %vm533, 1, 0
        %v550 = vsel %vm534, 1, 0
        %v551 = vsel %vm535, 1, 0
        %v552 = vsel %vm536, 1, 0
        %v553 = vsel %vm537, 1, 0
        %v554 = vsel %vm538, 1, 0
        %v555 = vsel %vm539, 1, 0
        %vm556 = vcmp.eq.s32.totalorder %v540, 1
        %vm557 = vcmp.eq.s32.totalorder %v541, 1
        %vm558 = vcmp.eq.s32.totalorder %v542, 1
        %vm559 = vcmp.eq.s32.totalorder %v543, 1
        %vm560 = vcmp.eq.s32.totalorder %v544, 1
        %vm561 = vcmp.eq.s32.totalorder %v545, 1
        %vm562 = vcmp.eq.s32.totalorder %v546, 1
        %vm563 = vcmp.eq.s32.totalorder %v547, 1
        %vm564 = vcmp.eq.s32.totalorder %v548, 1
        %vm565 = vcmp.eq.s32.totalorder %v549, 1
        %vm566 = vcmp.eq.s32.totalorder %v550, 1
        %vm567 = vcmp.eq.s32.totalorder %v551, 1
        %vm568 = vcmp.eq.s32.totalorder %v552, 1
        %vm569 = vcmp.eq.s32.totalorder %v553, 1
        %vm570 = vcmp.eq.s32.totalorder %v554, 1
        %vm571 = vcmp.eq.s32.totalorder %v555, 1
        %v572 = vsel %vm556, 0.0, %v505
        %v573 = vsel %vm557, 0.0, %v507
        %v574 = vsel %vm558, 0.0, %v477
        %v575 = vsel %vm559, 0.0, %v479
        %v576 = vsel %vm560, 0.0, %v481
        %v577 = vsel %vm561, 0.0, %v483
        %v578 = vsel %vm562, 0.0, %v485
        %v579 = vsel %vm563, 0.0, %v487
        %v580 = vsel %vm564, 0.0, %v489
        %v581 = vsel %vm565, 0.0, %v491
        %v582 = vsel %vm566, 0.0, %v493
        %v583 = vsel %vm567, 0.0, %v495
        %v584 = vsel %vm568, 0.0, %v497
        %v585 = vsel %vm569, 0.0, %v499
        %v586 = vsel %vm570, 0.0, %v501
        %v587 = vsel %vm571, 0.0, %v503
        %v588 = vadd.f32 %v382, %v572
        %v589 = vadd.f32 %v387, %v573
        %v590 = vadd.f32 %v392, %v574
        %v591 = vadd.f32 %v397, %v575
        %v592 = vadd.f32 %v402, %v576
        %v593 = vadd.f32 %v407, %v577
        %v594 = vadd.f32 %v412, %v578
        %v595 = vadd.f32 %v417, %v579
        %v596 = vadd.f32 %v422, %v580
        %v597 = vadd.f32 %v427, %v581
        %v598 = vadd.f32 %v432, %v582
        %v599 = vadd.f32 %v437, %v583
        %v600 = vadd.f32 %v442, %v584
        %v601 = vadd.f32 %v447, %v585
        %v602 = vadd.f32 %v452, %v586
        %v603 = vadd.f32 %v457, %v587
        %v604 = vlaneseq
        %v605 = vshrl.u32 %v604, 7
        %v606 = vsub.s32 0, %v605
        %v607 = vrot.slane %v244, %v606
        %v608 = vadd.f32 %v588, %v607
        %v609 = vadd.f32 %v589, %v607
        %v610 = vadd.f32 %v590, %v607
        %v611 = vadd.f32 %v591, %v607
        %v612 = vadd.f32 %v592, %v607
        %v613 = vadd.f32 %v593, %v607
        %v614 = vadd.f32 %v594, %v607
        %v615 = vadd.f32 %v595, %v607
        %v616 = vadd.f32 %v596, %v607
        %v617 = vadd.f32 %v597, %v607
        %v618 = vadd.f32 %v598, %v607
        %v619 = vadd.f32 %v599, %v607
        %v620 = vadd.f32 %v600, %v607
        %v621 = vadd.f32 %v601, %v607
        %v622 = vadd.f32 %v602, %v607
        %v623 = vadd.f32 %v603, %v607
        %v624 = vld [vmem:[%s3] sm:$0xff]
        %v625 = vld [vmem:[%s3 + $0x8] sm:$0xff]
        %v626 = vld [vmem:[%s3 + $0x10] sm:$0xff]
        %v627 = vld [vmem:[%s3 + $0x18] sm:$0xff]
        %v629 = vsel %vm266, %v608, 0
        %v632 = vsel %vm266, %v609, 0
        %v635 = vsel %vm266, %v610, 0
        %v638 = vsel %vm266, %v611, 0
        %v641 = vsel %vm266, %v612, 0
        %v644 = vsel %vm266, %v613, 0
        %v647 = vsel %vm266, %v614, 0
        %v650 = vsel %vm266, %v615, 0
        %v653 = vsel %vm266, %v616, 0
        %v656 = vsel %vm266, %v617, 0
        %v659 = vsel %vm266, %v618, 0
        %v662 = vsel %vm266, %v619, 0
        %v665 = vsel %vm266, %v620, 0
        %v668 = vsel %vm266, %v621, 0
        %v671 = vsel %vm266, %v622, 0
        %v674 = vsel %vm266, %v623, 0
        %676 = vmatprep.subr.mxu0 0.0
        %677 = vmatpush1.msra.mxu0 %v624
        %678 = vmatprep.subr.mxu0 0.0
        %679 = vmatpush1.msra.mxu0 %v625
        %680 = vmatprep.subr.mxu0 0.0
        %681 = vmatpush1.msra.mxu0 %v626
        %682 = vmatprep.subr.mxu0 0.0
        %683 = vmatpush1.msra.mxu0 %v627
        %684 = vmatprep.subr.mxu0 0.0
        %685 = vmatpush1.msra.mxu0 0.0
        %686 = vmatprep.subr.mxu0 0.0
        %687 = vmatpush1.msra.mxu0 0.0
        %688 = vmatprep.subr.mxu0 0.0
        %689 = vmatpush1.msra.mxu0 0.0
        %690 = vmatprep.subr.mxu0 0.0
        %691 = vmatpush1.msra.mxu0 0.0
        %692 = vmatprep.subr.mxu0 0.0
        %693 = vmatpush1.msra.mxu0 0.0
        %694 = vmatprep.subr.mxu0 0.0
        %695 = vmatpush1.msra.mxu0 0.0
        %696 = vmatprep.subr.mxu0 0.0
        %697 = vmatpush1.msra.mxu0 0.0
        %698 = vmatprep.subr.mxu0 0.0
        %699 = vmatpush1.msra.mxu0 0.0
        %700 = vmatprep.subr.mxu0 0.0
        %701 = vmatpush1.msra.mxu0 0.0
        %702 = vmatprep.subr.mxu0 0.0
        %703 = vmatpush1.msra.mxu0 0.0
        %704 = vmatprep.subr.mxu0 0.0
        %705 = vmatpush1.msra.mxu0 0.0
        %706 = vmatprep.subr.mxu0 0.0
        %707 = vmatpush1.msra.mxu0 0.0
        %708 = vmatprep.subr.mxu0 0.0
        %709 = vmatpush1.msra.mxu0 0.0
        %710 = vmatprep.subr.mxu0 0.0
        %711 = vmatpush1.msra.mxu0 0.0
        %712 = vmatprep.subr.mxu0 0.0
        %713 = vmatpush1.msra.mxu0 0.0
        %714 = vmatprep.subr.mxu0 0.0
        %715 = vmatpush1.msra.mxu0 0.0
        %716 = vmatprep.subr.mxu0 0.0
        %717 = vmatpush1.msra.mxu0 0.0
        %718 = vmatprep.subr.mxu0 0.0
        %719 = vmatpush1.msra.mxu0 0.0
        %720 = vmatprep.subr.mxu0 0.0
        %721 = vmatpush1.msra.mxu0 0.0
        %722 = vmatprep.subr.mxu0 0.0
        %723 = vmatpush1.msra.mxu0 0.0
        %724 = vmatprep.subr.mxu0 0.0
        %725 = vmatpush1.msra.mxu0 0.0
        %726 = vmatprep.subr.mxu0 0.0
        %727 = vmatpush1.msra.mxu0 0.0
        %728 = vmatprep.subr.mxu0 0.0
        %729 = vmatpush1.msra.mxu0 0.0
        %730 = vmatprep.subr.mxu0 0.0
        %731 = vmatpush1.msra.mxu0 0.0
        %732 = vmatprep.subr.mxu0 0.0
        %733 = vmatpush1.msra.mxu0 0.0
        %734 = vmatprep.subr.mxu0 0.0
        %735 = vmatpush1.msra.mxu0 0.0
        %736 = vmatprep.subr.mxu0 0.0
        %737 = vmatpush1.msra.mxu0 0.0
        %738 = vmatprep.subr.mxu0 0.0
        %739 = vmatpush1.msra.mxu0 0.0
        %740 = vmatprep.mubr.f32.mxu0 0.0
        %741 = vmatmul.mubr.f32.gmra.mrb[0].mxu0 %v629
        %v742 = vpop.f32.mrb[0].mxu0
        %v743 = vadd.f32 0.0, %v742
        %v744 = vpop.f32.mrb[0].mxu0
        %745 = vmatprep.mubr.f32.mxu0 0.0
        %746 = vmatmul.mubr.f32.gmra.mrb[0].mxu0 %v632
        %v747 = vpop.f32.mrb[0].mxu0
        %v748 = vadd.f32 0.0, %v747
        %v749 = vpop.f32.mrb[0].mxu0
        %750 = vmatprep.mubr.f32.mxu0 0.0
        %751 = vmatmul.mubr.f32.gmra.mrb[0].mxu0 %v635
        %v752 = vpop.f32.mrb[0].mxu0
        %v753 = vadd.f32 0.0, %v752
        %v754 = vpop.f32.mrb[0].mxu0
        %755 = vmatprep.mubr.f32.mxu0 0.0
        %756 = vmatmul.mubr.f32.gmra.mrb[0].mxu0 %v638
        %v757 = vpop.f32.mrb[0].mxu0
        %v758 = vadd.f32 0.0, %v757
        %v759 = vpop.f32.mrb[0].mxu0
        %760 = vmatprep.mubr.f32.mxu0 0.0
        %761 = vmatmul.mubr.f32.gmra.mrb[0].mxu0 %v641
        %v762 = vpop.f32.mrb[0].mxu0
        %v763 = vadd.f32 0.0, %v762
        %v764 = vpop.f32.mrb[0].mxu0
        %765 = vmatprep.mubr.f32.mxu0 0.0
        %766 = vmatmul.mubr.f32.gmra.mrb[0].mxu0 %v644
        %v767 = vpop.f32.mrb[0].mxu0
        %v768 = vadd.f32 0.0, %v767
        %v769 = vpop.f32.mrb[0].mxu0
        %770 = vmatprep.mubr.f32.mxu0 0.0
        %771 = vmatmul.mubr.f32.gmra.mrb[0].mxu0 %v647
        %v772 = vpop.f32.mrb[0].mxu0
        %v773 = vadd.f32 0.0, %v772
        %v774 = vpop.f32.mrb[0].mxu0
        %775 = vmatprep.mubr.f32.mxu0 0.0
        %776 = vmatmul.mubr.f32.gmra.mrb[0].mxu0 %v650
        %v777 = vpop.f32.mrb[0].mxu0
        %v778 = vadd.f32 0.0, %v777
        %v779 = vpop.f32.mrb[0].mxu0
        %780 = vmatprep.mubr.f32.mxu0 0.0
        %781 = vmatmul.mubr.f32.gmra.mrb[0].mxu0 %v653
        %v782 = vpop.f32.mrb[0].mxu0
        %v783 = vadd.f32 0.0, %v782
        %v784 = vpop.f32.mrb[0].mxu0
        %785 = vmatprep.mubr.f32.mxu0 0.0
        %786 = vmatmul.mubr.f32.gmra.mrb[0].mxu0 %v656
        %v787 = vpop.f32.mrb[0].mxu0
        %v788 = vadd.f32 0.0, %v787
        %v789 = vpop.f32.mrb[0].mxu0
        %790 = vmatprep.mubr.f32.mxu0 0.0
        %791 = vmatmul.mubr.f32.gmra.mrb[0].mxu0 %v659
        %v792 = vpop.f32.mrb[0].mxu0
        %v793 = vadd.f32 0.0, %v792
        %v794 = vpop.f32.mrb[0].mxu0
        %795 = vmatprep.mubr.f32.mxu0 0.0
        %796 = vmatmul.mubr.f32.gmra.mrb[0].mxu0 %v662
        %v797 = vpop.f32.mrb[0].mxu0
        %v798 = vadd.f32 0.0, %v797
        %v799 = vpop.f32.mrb[0].mxu0
        %800 = vmatprep.mubr.f32.mxu0 0.0
        %801 = vmatmul.mubr.f32.gmra.mrb[0].mxu0 %v665
        %v802 = vpop.f32.mrb[0].mxu0
        %v803 = vadd.f32 0.0, %v802
        %v804 = vpop.f32.mrb[0].mxu0
        %805 = vmatprep.mubr.f32.mxu0 0.0
        %806 = vmatmul.mubr.f32.gmra.mrb[0].mxu0 %v668
        %v807 = vpop.f32.mrb[0].mxu0
        %v808 = vadd.f32 0.0, %v807
        %v809 = vpop.f32.mrb[0].mxu0
        %810 = vmatprep.mubr.f32.mxu0 0.0
        %811 = vmatmul.mubr.f32.gmra.mrb[0].mxu0 %v671
        %v812 = vpop.f32.mrb[0].mxu0
        %v813 = vadd.f32 0.0, %v812
        %v814 = vpop.f32.mrb[0].mxu0
        %815 = vmatprep.mubr.f32.mxu0 0.0
        %816 = vmatmul.mubr.f32.gmra.mrb[0].mxu0 %v674
        %v817 = vpop.f32.mrb[0].mxu0
        %v818 = vadd.f32 0.0, %v817
        %v819 = vpop.f32.mrb[0].mxu0
        %820 = vdwg.mxu0
        %823 = vrot.lane.b32.xlu0 %v743, 96
        %v824 = vpop.permute.xlu0 %823
        %825 = vrot.lane.b32.xlu0 %v748, 96
        %v826 = vpop.permute.xlu0 %825
        %vm829 = vcmask 130048
        %v831 = vsel %vm829, %v242, 0
        %v834 = vsel %vm829, %v243, 0
        %836 = vmatprep.subr.mxu0 0.0
        %837 = vmatpush1.msra.mxu0 %v824
        %838 = vmatprep.subr.mxu0 0.0
        %839 = vmatpush1.msra.mxu0 %v826
        %840 = vmatprep.subr.mxu0 0.0
        %841 = vmatpush1.msra.mxu0 0.0
        %842 = vmatprep.subr.mxu0 0.0
        %843 = vmatpush1.msra.mxu0 0.0
        %844 = vmatprep.subr.mxu0 0.0
        %845 = vmatpush1.msra.mxu0 0.0
        %846 = vmatprep.subr.mxu0 0.0
        %847 = vmatpush1.msra.mxu0 0.0
        %848 = vmatprep.subr.mxu0 0.0
        %849 = vmatpush1.msra.mxu0 0.0
        %850 = vmatprep.subr.mxu0 0.0
        %851 = vmatpush1.msra.mxu0 0.0
        %852 = vmatprep.subr.mxu0 0.0
        %853 = vmatpush1.msra.mxu0 0.0
        %854 = vmatprep.subr.mxu0 0.0
        %855 = vmatpush1.msra.mxu0 0.0
        %856 = vmatprep.subr.mxu0 0.0
        %857 = vmatpush1.msra.mxu0 0.0
        %858 = vmatprep.subr.mxu0 0.0
        %859 = vmatpush1.msra.mxu0 0.0
        %860 = vmatprep.subr.mxu0 0.0
        %861 = vmatpush1.msra.mxu0 0.0
        %862 = vmatprep.subr.mxu0 0.0
        %863 = vmatpush1.msra.mxu0 0.0
        %864 = vmatprep.subr.mxu0 0.0
        %865 = vmatpush1.msra.mxu0 0.0
        %866 = vmatprep.subr.mxu0 0.0
        %867 = vmatpush1.msra.mxu0 0.0
        %868 = vmatprep.subr.mxu0 0.0
        %869 = vmatpush1.msra.mxu0 0.0
        %870 = vmatprep.subr.mxu0 0.0
        %871 = vmatpush1.msra.mxu0 0.0
        %872 = vmatprep.subr.mxu0 0.0
        %873 = vmatpush1.msra.mxu0 0.0
        %874 = vmatprep.subr.mxu0 0.0
        %875 = vmatpush1.msra.mxu0 0.0
        %876 = vmatprep.subr.mxu0 0.0
        %877 = vmatpush1.msra.mxu0 0.0
        %878 = vmatprep.subr.mxu0 0.0
        %879 = vmatpush1.msra.mxu0 0.0
        %880 = vmatprep.subr.mxu0 0.0
        %881 = vmatpush1.msra.mxu0 0.0
        %882 = vmatprep.subr.mxu0 0.0
        %883 = vmatpush1.msra.mxu0 0.0
        %884 = vmatprep.subr.mxu0 0.0
        %885 = vmatpush1.msra.mxu0 0.0
        %886 = vmatprep.subr.mxu0 0.0
        %887 = vmatpush1.msra.mxu0 0.0
        %888 = vmatprep.subr.mxu0 0.0
        %889 = vmatpush1.msra.mxu0 0.0
        %890 = vmatprep.subr.mxu0 0.0
        %891 = vmatpush1.msra.mxu0 0.0
        %892 = vmatprep.subr.mxu0 0.0
        %893 = vmatpush1.msra.mxu0 0.0
        %894 = vmatprep.subr.mxu0 0.0
        %895 = vmatpush1.msra.mxu0 0.0
        %896 = vmatprep.subr.mxu0 0.0
        %897 = vmatpush1.msra.mxu0 0.0
        %898 = vmatprep.subr.mxu0 0.0
        %899 = vmatpush1.msra.mxu0 0.0
        %900 = vmatprep.mubr.f32.mxu0 0.0
        %901 = vmatmul.mubr.f32.gmra.mrb[0].mxu0 %v831
        %v902 = vpop.f32.mrb[0].mxu0
        %v903 = vadd.f32 0.0, %v902
        %v904 = vpop.f32.mrb[0].mxu0
        %905 = vmatprep.mubr.f32.mxu0 0.0
        %906 = vmatmul.mubr.f32.gmra.mrb[0].mxu0 %v834
        %v907 = vpop.f32.mrb[0].mxu0
        %v908 = vadd.f32 0.0, %v907
        %v909 = vpop.f32.mrb[0].mxu0
        %910 = vdwg.mxu0
        %911 = vst.msk [vmem:[#allocation2] sm:$0xff] %vm266, %v903
        %912 = vst.msk [vmem:[#allocation2 + $0x8] sm:$0xff] %vm266, %v908
        %915 = vrot.lane.b32.xlu0 %v753, 96
        %v916 = vpop.permute.xlu0 %915
        %917 = vrot.lane.b32.xlu0 %v758, 96
        %v918 = vpop.permute.xlu0 %917
        %921 = vmatprep.subr.mxu0 0.0
        %922 = vmatpush1.msra.mxu0 %v916
        %923 = vmatprep.subr.mxu0 0.0
        %924 = vmatpush1.msra.mxu0 %v918
        %925 = vmatprep.subr.mxu0 0.0
        %926 = vmatpush1.msra.mxu0 0.0
        %927 = vmatprep.subr.mxu0 0.0
        %928 = vmatpush1.msra.mxu0 0.0
        %929 = vmatprep.subr.mxu0 0.0
        %930 = vmatpush1.msra.mxu0 0.0
        %931 = vmatprep.subr.mxu0 0.0
        %932 = vmatpush1.msra.mxu0 0.0
        %933 = vmatprep.subr.mxu0 0.0
        %934 = vmatpush1.msra.mxu0 0.0
        %935 = vmatprep.subr.mxu0 0.0
        %936 = vmatpush1.msra.mxu0 0.0
        %937 = vmatprep.subr.mxu0 0.0
        %938 = vmatpush1.msra.mxu0 0.0
        %939 = vmatprep.subr.mxu0 0.0
        %940 = vmatpush1.msra.mxu0 0.0
        %941 = vmatprep.subr.mxu0 0.0
        %942 = vmatpush1.msra.mxu0 0.0
        %943 = vmatprep.subr.mxu0 0.0
        %944 = vmatpush1.msra.mxu0 0.0
        %945 = vmatprep.subr.mxu0 0.0
        %946 = vmatpush1.msra.mxu0 0.0
        %947 = vmatprep.subr.mxu0 0.0
        %948 = vmatpush1.msra.mxu0 0.0
        %949 = vmatprep.subr.mxu0 0.0
        %950 = vmatpush1.msra.mxu0 0.0
        %951 = vmatprep.subr.mxu0 0.0
        %952 = vmatpush1.msra.mxu0 0.0
        %953 = vmatprep.subr.mxu0 0.0
        %954 = vmatpush1.msra.mxu0 0.0
        %955 = vmatprep.subr.mxu0 0.0
        %956 = vmatpush1.msra.mxu0 0.0
        %957 = vmatprep.subr.mxu0 0.0
        %958 = vmatpush1.msra.mxu0 0.0
        %959 = vmatprep.subr.mxu0 0.0
        %960 = vmatpush1.msra.mxu0 0.0
        %961 = vmatprep.subr.mxu0 0.0
        %962 = vmatpush1.msra.mxu0 0.0
        %963 = vmatprep.subr.mxu0 0.0
        %964 = vmatpush1.msra.mxu0 0.0
        %965 = vmatprep.subr.mxu0 0.0
        %966 = vmatpush1.msra.mxu0 0.0
        %967 = vmatprep.subr.mxu0 0.0
        %968 = vmatpush1.msra.mxu0 0.0
        %969 = vmatprep.subr.mxu0 0.0
        %970 = vmatpush1.msra.mxu0 0.0
        %971 = vmatprep.subr.mxu0 0.0
        %972 = vmatpush1.msra.mxu0 0.0
        %973 = vmatprep.subr.mxu0 0.0
        %974 = vmatpush1.msra.mxu0 0.0
        %975 = vmatprep.subr.mxu0 0.0
        %976 = vmatpush1.msra.mxu0 0.0
        %977 = vmatprep.subr.mxu0 0.0
        %978 = vmatpush1.msra.mxu0 0.0
        %979 = vmatprep.subr.mxu0 0.0
        %980 = vmatpush1.msra.mxu0 0.0
        %981 = vmatprep.subr.mxu0 0.0
        %982 = vmatpush1.msra.mxu0 0.0
        %983 = vmatprep.subr.mxu0 0.0
        %984 = vmatpush1.msra.mxu0 0.0
        %985 = vmatprep.mubr.f32.mxu0 0.0
        %986 = vmatmul.mubr.f32.gmra.mrb[0].mxu0 %v831
        %v987 = vpop.f32.mrb[0].mxu0
        %v988 = vadd.f32 0.0, %v987
        %v989 = vpop.f32.mrb[0].mxu0
        %990 = vmatprep.mubr.f32.mxu0 0.0
        %991 = vmatmul.mubr.f32.gmra.mrb[0].mxu0 %v834
        %v992 = vpop.f32.mrb[0].mxu0
        %v993 = vadd.f32 0.0, %v992
        %v994 = vpop.f32.mrb[0].mxu0
        %995 = vdwg.mxu0
        %996 = vst.msk [vmem:[#allocation2 + $0x10] sm:$0xff] %vm266, %v988
        %997 = vst.msk [vmem:[#allocation2 + $0x18] sm:$0xff] %vm266, %v993
        %1000 = vrot.lane.b32.xlu0 %v763, 96
        %v1001 = vpop.permute.xlu0 %1000
        %1002 = vrot.lane.b32.xlu0 %v768, 96
        %v1003 = vpop.permute.xlu0 %1002
        %1006 = vmatprep.subr.mxu0 0.0
        %1007 = vmatpush1.msra.mxu0 %v1001
        %1008 = vmatprep.subr.mxu0 0.0
        %1009 = vmatpush1.msra.mxu0 %v1003
        %1010 = vmatprep.subr.mxu0 0.0
        %1011 = vmatpush1.msra.mxu0 0.0
        %1012 = vmatprep.subr.mxu0 0.0
        %1013 = vmatpush1.msra.mxu0 0.0
        %1014 = vmatprep.subr.mxu0 0.0
        %1015 = vmatpush1.msra.mxu0 0.0
        %1016 = vmatprep.subr.mxu0 0.0
        %1017 = vmatpush1.msra.mxu0 0.0
        %1018 = vmatprep.subr.mxu0 0.0
        %1019 = vmatpush1.msra.mxu0 0.0
        %1020 = vmatprep.subr.mxu0 0.0
        %1021 = vmatpush1.msra.mxu0 0.0
        %1022 = vmatprep.subr.mxu0 0.0
        %1023 = vmatpush1.msra.mxu0 0.0
        %1024 = vmatprep.subr.mxu0 0.0
        %1025 = vmatpush1.msra.mxu0 0.0
        %1026 = vmatprep.subr.mxu0 0.0
        %1027 = vmatpush1.msra.mxu0 0.0
        %1028 = vmatprep.subr.mxu0 0.0
        %1029 = vmatpush1.msra.mxu0 0.0
        %1030 = vmatprep.subr.mxu0 0.0
        %1031 = vmatpush1.msra.mxu0 0.0
        %1032 = vmatprep.subr.mxu0 0.0
        %1033 = vmatpush1.msra.mxu0 0.0
        %1034 = vmatprep.subr.mxu0 0.0
        %1035 = vmatpush1.msra.mxu0 0.0
        %1036 = vmatprep.subr.mxu0 0.0
        %1037 = vmatpush1.msra.mxu0 0.0
        %1038 = vmatprep.subr.mxu0 0.0
        %1039 = vmatpush1.msra.mxu0 0.0
        %1040 = vmatprep.subr.mxu0 0.0
        %1041 = vmatpush1.msra.mxu0 0.0
        %1042 = vmatprep.subr.mxu0 0.0
        %1043 = vmatpush1.msra.mxu0 0.0
        %1044 = vmatprep.subr.mxu0 0.0
        %1045 = vmatpush1.msra.mxu0 0.0
        %1046 = vmatprep.subr.mxu0 0.0
        %1047 = vmatpush1.msra.mxu0 0.0
        %1048 = vmatprep.subr.mxu0 0.0
        %1049 = vmatpush1.msra.mxu0 0.0
        %1050 = vmatprep.subr.mxu0 0.0
        %1051 = vmatpush1.msra.mxu0 0.0
        %1052 = vmatprep.subr.mxu0 0.0
        %1053 = vmatpush1.msra.mxu0 0.0
        %1054 = vmatprep.subr.mxu0 0.0
        %1055 = vmatpush1.msra.mxu0 0.0
        %1056 = vmatprep.subr.mxu0 0.0
        %1057 = vmatpush1.msra.mxu0 0.0
        %1058 = vmatprep.subr.mxu0 0.0
        %1059 = vmatpush1.msra.mxu0 0.0
        %1060 = vmatprep.subr.mxu0 0.0
        %1061 = vmatpush1.msra.mxu0 0.0
        %1062 = vmatprep.subr.mxu0 0.0
        %1063 = vmatpush1.msra.mxu0 0.0
        %1064 = vmatprep.subr.mxu0 0.0
        %1065 = vmatpush1.msra.mxu0 0.0
        %1066 = vmatprep.subr.mxu0 0.0
        %1067 = vmatpush1.msra.mxu0 0.0
        %1068 = vmatprep.subr.mxu0 0.0
        %1069 = vmatpush1.msra.mxu0 0.0
        %1070 = vmatprep.mubr.f32.mxu0 0.0
        %1071 = vmatmul.mubr.f32.gmra.mrb[0].mxu0 %v831
        %v1072 = vpop.f32.mrb[0].mxu0
        %v1073 = vadd.f32 0.0, %v1072
        %v1074 = vpop.f32.mrb[0].mxu0
        %1075 = vmatprep.mubr.f32.mxu0 0.0
        %1076 = vmatmul.mubr.f32.gmra.mrb[0].mxu0 %v834
        %v1077 = vpop.f32.mrb[0].mxu0
        %v1078 = vadd.f32 0.0, %v1077
        %v1079 = vpop.f32.mrb[0].mxu0
        %1080 = vdwg.mxu0
        %1081 = vst.msk [vmem:[#allocation2 + $0x20] sm:$0xff] %vm266, %v1073
        %1082 = vst.msk [vmem:[#allocation2 + $0x28] sm:$0xff] %vm266, %v1078
        %1085 = vrot.lane.b32.xlu0 %v773, 96
        %v1086 = vpop.permute.xlu0 %1085
        %1087 = vrot.lane.b32.xlu0 %v778, 96
        %v1088 = vpop.permute.xlu0 %1087
        %1091 = vmatprep.subr.mxu0 0.0
        %1092 = vmatpush1.msra.mxu0 %v1086
        %1093 = vmatprep.subr.mxu0 0.0
        %1094 = vmatpush1.msra.mxu0 %v1088
        %1095 = vmatprep.subr.mxu0 0.0
        %1096 = vmatpush1.msra.mxu0 0.0
        %1097 = vmatprep.subr.mxu0 0.0
        %1098 = vmatpush1.msra.mxu0 0.0
        %1099 = vmatprep.subr.mxu0 0.0
        %1100 = vmatpush1.msra.mxu0 0.0
        %1101 = vmatprep.subr.mxu0 0.0
        %1102 = vmatpush1.msra.mxu0 0.0
        %1103 = vmatprep.subr.mxu0 0.0
        %1104 = vmatpush1.msra.mxu0 0.0
        %1105 = vmatprep.subr.mxu0 0.0
        %1106 = vmatpush1.msra.mxu0 0.0
        %1107 = vmatprep.subr.mxu0 0.0
        %1108 = vmatpush1.msra.mxu0 0.0
        %1109 = vmatprep.subr.mxu0 0.0
        %1110 = vmatpush1.msra.mxu0 0.0
        %1111 = vmatprep.subr.mxu0 0.0
        %1112 = vmatpush1.msra.mxu0 0.0
        %1113 = vmatprep.subr.mxu0 0.0
        %1114 = vmatpush1.msra.mxu0 0.0
        %1115 = vmatprep.subr.mxu0 0.0
        %1116 = vmatpush1.msra.mxu0 0.0
        %1117 = vmatprep.subr.mxu0 0.0
        %1118 = vmatpush1.msra.mxu0 0.0
        %1119 = vmatprep.subr.mxu0 0.0
        %1120 = vmatpush1.msra.mxu0 0.0
        %1121 = vmatprep.subr.mxu0 0.0
        %1122 = vmatpush1.msra.mxu0 0.0
        %1123 = vmatprep.subr.mxu0 0.0
        %1124 = vmatpush1.msra.mxu0 0.0
        %1125 = vmatprep.subr.mxu0 0.0
        %1126 = vmatpush1.msra.mxu0 0.0
        %1127 = vmatprep.subr.mxu0 0.0
        %1128 = vmatpush1.msra.mxu0 0.0
        %1129 = vmatprep.subr.mxu0 0.0
        %1130 = vmatpush1.msra.mxu0 0.0
        %1131 = vmatprep.subr.mxu0 0.0
        %1132 = vmatpush1.msra.mxu0 0.0
        %1133 = vmatprep.subr.mxu0 0.0
        %1134 = vmatpush1.msra.mxu0 0.0
        %1135 = vmatprep.subr.mxu0 0.0
        %1136 = vmatpush1.msra.mxu0 0.0
        %1137 = vmatprep.subr.mxu0 0.0
        %1138 = vmatpush1.msra.mxu0 0.0
        %1139 = vmatprep.subr.mxu0 0.0
        %1140 = vmatpush1.msra.mxu0 0.0
        %1141 = vmatprep.subr.mxu0 0.0
        %1142 = vmatpush1.msra.mxu0 0.0
        %1143 = vmatprep.subr.mxu0 0.0
        %1144 = vmatpush1.msra.mxu0 0.0
        %1145 = vmatprep.subr.mxu0 0.0
        %1146 = vmatpush1.msra.mxu0 0.0
        %1147 = vmatprep.subr.mxu0 0.0
        %1148 = vmatpush1.msra.mxu0 0.0
        %1149 = vmatprep.subr.mxu0 0.0
        %1150 = vmatpush1.msra.mxu0 0.0
        %1151 = vmatprep.subr.mxu0 0.0
        %1152 = vmatpush1.msra.mxu0 0.0
        %1153 = vmatprep.subr.mxu0 0.0
        %1154 = vmatpush1.msra.mxu0 0.0
        %1155 = vmatprep.mubr.f32.mxu0 0.0
        %1156 = vmatmul.mubr.f32.gmra.mrb[0].mxu0 %v831
        %v1157 = vpop.f32.mrb[0].mxu0
        %v1158 = vadd.f32 0.0, %v1157
        %v1159 = vpop.f32.mrb[0].mxu0
        %1160 = vmatprep.mubr.f32.mxu0 0.0
        %1161 = vmatmul.mubr.f32.gmra.mrb[0].mxu0 %v834
        %v1162 = vpop.f32.mrb[0].mxu0
        %v1163 = vadd.f32 0.0, %v1162
        %v1164 = vpop.f32.mrb[0].mxu0
        %1165 = vdwg.mxu0
        %1166 = vst.msk [vmem:[#allocation2 + $0x30] sm:$0xff] %vm266, %v1158
        %1167 = vst.msk [vmem:[#allocation2 + $0x38] sm:$0xff] %vm266, %v1163
        %1170 = vrot.lane.b32.xlu0 %v783, 96
        %v1171 = vpop.permute.xlu0 %1170
        %1172 = vrot.lane.b32.xlu0 %v788, 96
        %v1173 = vpop.permute.xlu0 %1172
        %1176 = vmatprep.subr.mxu0 0.0
        %1177 = vmatpush1.msra.mxu0 %v1171
        %1178 = vmatprep.subr.mxu0 0.0
        %1179 = vmatpush1.msra.mxu0 %v1173
        %1180 = vmatprep.subr.mxu0 0.0
        %1181 = vmatpush1.msra.mxu0 0.0
        %1182 = vmatprep.subr.mxu0 0.0
        %1183 = vmatpush1.msra.mxu0 0.0
        %1184 = vmatprep.subr.mxu0 0.0
        %1185 = vmatpush1.msra.mxu0 0.0
        %1186 = vmatprep.subr.mxu0 0.0
        %1187 = vmatpush1.msra.mxu0 0.0
        %1188 = vmatprep.subr.mxu0 0.0
        %1189 = vmatpush1.msra.mxu0 0.0
        %1190 = vmatprep.subr.mxu0 0.0
        %1191 = vmatpush1.msra.mxu0 0.0
        %1192 = vmatprep.subr.mxu0 0.0
        %1193 = vmatpush1.msra.mxu0 0.0
        %1194 = vmatprep.subr.mxu0 0.0
        %1195 = vmatpush1.msra.mxu0 0.0
        %1196 = vmatprep.subr.mxu0 0.0
        %1197 = vmatpush1.msra.mxu0 0.0
        %1198 = vmatprep.subr.mxu0 0.0
        %1199 = vmatpush1.msra.mxu0 0.0
        %1200 = vmatprep.subr.mxu0 0.0
        %1201 = vmatpush1.msra.mxu0 0.0
        %1202 = vmatprep.subr.mxu0 0.0
        %1203 = vmatpush1.msra.mxu0 0.0
        %1204 = vmatprep.subr.mxu0 0.0
        %1205 = vmatpush1.msra.mxu0 0.0
        %1206 = vmatprep.subr.mxu0 0.0
        %1207 = vmatpush1.msra.mxu0 0.0
        %1208 = vmatprep.subr.mxu0 0.0
        %1209 = vmatpush1.msra.mxu0 0.0
        %1210 = vmatprep.subr.mxu0 0.0
        %1211 = vmatpush1.msra.mxu0 0.0
        %1212 = vmatprep.subr.mxu0 0.0
        %1213 = vmatpush1.msra.mxu0 0.0
        %1214 = vmatprep.subr.mxu0 0.0
        %1215 = vmatpush1.msra.mxu0 0.0
        %1216 = vmatprep.subr.mxu0 0.0
        %1217 = vmatpush1.msra.mxu0 0.0
        %1218 = vmatprep.subr.mxu0 0.0
        %1219 = vmatpush1.msra.mxu0 0.0
        %1220 = vmatprep.subr.mxu0 0.0
        %1221 = vmatpush1.msra.mxu0 0.0
        %1222 = vmatprep.subr.mxu0 0.0
        %1223 = vmatpush1.msra.mxu0 0.0
        %1224 = vmatprep.subr.mxu0 0.0
        %1225 = vmatpush1.msra.mxu0 0.0
        %1226 = vmatprep.subr.mxu0 0.0
        %1227 = vmatpush1.msra.mxu0 0.0
        %1228 = vmatprep.subr.mxu0 0.0
        %1229 = vmatpush1.msra.mxu0 0.0
        %1230 = vmatprep.subr.mxu0 0.0
        %1231 = vmatpush1.msra.mxu0 0.0
        %1232 = vmatprep.subr.mxu0 0.0
        %1233 = vmatpush1.msra.mxu0 0.0
        %1234 = vmatprep.subr.mxu0 0.0
        %1235 = vmatpush1.msra.mxu0 0.0
        %1236 = vmatprep.subr.mxu0 0.0
        %1237 = vmatpush1.msra.mxu0 0.0
        %1238 = vmatprep.subr.mxu0 0.0
        %1239 = vmatpush1.msra.mxu0 0.0
        %1240 = vmatprep.mubr.f32.mxu0 0.0
        %1241 = vmatmul.mubr.f32.gmra.mrb[0].mxu0 %v831
        %v1242 = vpop.f32.mrb[0].mxu0
        %v1243 = vadd.f32 0.0, %v1242
        %v1244 = vpop.f32.mrb[0].mxu0
        %1245 = vmatprep.mubr.f32.mxu0 0.0
        %1246 = vmatmul.mubr.f32.gmra.mrb[0].mxu0 %v834
        %v1247 = vpop.f32.mrb[0].mxu0
        %v1248 = vadd.f32 0.0, %v1247
        %v1249 = vpop.f32.mrb[0].mxu0
        %1250 = vdwg.mxu0
        %1251 = vst.msk [vmem:[#allocation2 + $0x40] sm:$0xff] %vm266, %v1243
        %1252 = vst.msk [vmem:[#allocation2 + $0x48] sm:$0xff] %vm266, %v1248
        %1255 = vrot.lane.b32.xlu0 %v793, 96
        %v1256 = vpop.permute.xlu0 %1255
        %1257 = vrot.lane.b32.xlu0 %v798, 96
        %v1258 = vpop.permute.xlu0 %1257
        %1261 = vmatprep.subr.mxu0 0.0
        %1262 = vmatpush1.msra.mxu0 %v1256
        %1263 = vmatprep.subr.mxu0 0.0
        %1264 = vmatpush1.msra.mxu0 %v1258
        %1265 = vmatprep.subr.mxu0 0.0
        %1266 = vmatpush1.msra.mxu0 0.0
        %1267 = vmatprep.subr.mxu0 0.0
        %1268 = vmatpush1.msra.mxu0 0.0
        %1269 = vmatprep.subr.mxu0 0.0
        %1270 = vmatpush1.msra.mxu0 0.0
        %1271 = vmatprep.subr.mxu0 0.0
        %1272 = vmatpush1.msra.mxu0 0.0
        %1273 = vmatprep.subr.mxu0 0.0
        %1274 = vmatpush1.msra.mxu0 0.0
        %1275 = vmatprep.subr.mxu0 0.0
        %1276 = vmatpush1.msra.mxu0 0.0
        %1277 = vmatprep.subr.mxu0 0.0
        %1278 = vmatpush1.msra.mxu0 0.0
        %1279 = vmatprep.subr.mxu0 0.0
        %1280 = vmatpush1.msra.mxu0 0.0
        %1281 = vmatprep.subr.mxu0 0.0
        %1282 = vmatpush1.msra.mxu0 0.0
        %1283 = vmatprep.subr.mxu0 0.0
        %1284 = vmatpush1.msra.mxu0 0.0
        %1285 = vmatprep.subr.mxu0 0.0
        %1286 = vmatpush1.msra.mxu0 0.0
        %1287 = vmatprep.subr.mxu0 0.0
        %1288 = vmatpush1.msra.mxu0 0.0
        %1289 = vmatprep.subr.mxu0 0.0
        %1290 = vmatpush1.msra.mxu0 0.0
        %1291 = vmatprep.subr.mxu0 0.0
        %1292 = vmatpush1.msra.mxu0 0.0
        %1293 = vmatprep.subr.mxu0 0.0
        %1294 = vmatpush1.msra.mxu0 0.0
        %1295 = vmatprep.subr.mxu0 0.0
        %1296 = vmatpush1.msra.mxu0 0.0
        %1297 = vmatprep.subr.mxu0 0.0
        %1298 = vmatpush1.msra.mxu0 0.0
        %1299 = vmatprep.subr.mxu0 0.0
        %1300 = vmatpush1.msra.mxu0 0.0
        %1301 = vmatprep.subr.mxu0 0.0
        %1302 = vmatpush1.msra.mxu0 0.0
        %1303 = vmatprep.subr.mxu0 0.0
        %1304 = vmatpush1.msra.mxu0 0.0
        %1305 = vmatprep.subr.mxu0 0.0
        %1306 = vmatpush1.msra.mxu0 0.0
        %1307 = vmatprep.subr.mxu0 0.0
        %1308 = vmatpush1.msra.mxu0 0.0
        %1309 = vmatprep.subr.mxu0 0.0
        %1310 = vmatpush1.msra.mxu0 0.0
        %1311 = vmatprep.subr.mxu0 0.0
        %1312 = vmatpush1.msra.mxu0 0.0
        %1313 = vmatprep.subr.mxu0 0.0
        %1314 = vmatpush1.msra.mxu0 0.0
        %1315 = vmatprep.subr.mxu0 0.0
        %1316 = vmatpush1.msra.mxu0 0.0
        %1317 = vmatprep.subr.mxu0 0.0
        %1318 = vmatpush1.msra.mxu0 0.0
        %1319 = vmatprep.subr.mxu0 0.0
        %1320 = vmatpush1.msra.mxu0 0.0
        %1321 = vmatprep.subr.mxu0 0.0
        %1322 = vmatpush1.msra.mxu0 0.0
        %1323 = vmatprep.subr.mxu0 0.0
        %1324 = vmatpush1.msra.mxu0 0.0
        %1325 = vmatprep.mubr.f32.mxu0 0.0
        %1326 = vmatmul.mubr.f32.gmra.mrb[0].mxu0 %v831
        %v1327 = vpop.f32.mrb[0].mxu0
        %v1328 = vadd.f32 0.0, %v1327
        %v1329 = vpop.f32.mrb[0].mxu0
        %1330 = vmatprep.mubr.f32.mxu0 0.0
        %1331 = vmatmul.mubr.f32.gmra.mrb[0].mxu0 %v834
        %v1332 = vpop.f32.mrb[0].mxu0
        %v1333 = vadd.f32 0.0, %v1332
        %v1334 = vpop.f32.mrb[0].mxu0
        %1335 = vdwg.mxu0
        %1336 = vst.msk [vmem:[#allocation2 + $0x50] sm:$0xff] %vm266, %v1328
        %1337 = vst.msk [vmem:[#allocation2 + $0x58] sm:$0xff] %vm266, %v1333
        %1340 = vrot.lane.b32.xlu0 %v803, 96
        %v1341 = vpop.permute.xlu0 %1340
        %1342 = vrot.lane.b32.xlu0 %v808, 96
        %v1343 = vpop.permute.xlu0 %1342
        %1346 = vmatprep.subr.mxu0 0.0
        %1347 = vmatpush1.msra.mxu0 %v1341
        %1348 = vmatprep.subr.mxu0 0.0
        %1349 = vmatpush1.msra.mxu0 %v1343
        %1350 = vmatprep.subr.mxu0 0.0
        %1351 = vmatpush1.msra.mxu0 0.0
        %1352 = vmatprep.subr.mxu0 0.0
        %1353 = vmatpush1.msra.mxu0 0.0
        %1354 = vmatprep.subr.mxu0 0.0
        %1355 = vmatpush1.msra.mxu0 0.0
        %1356 = vmatprep.subr.mxu0 0.0
        %1357 = vmatpush1.msra.mxu0 0.0
        %1358 = vmatprep.subr.mxu0 0.0
        %1359 = vmatpush1.msra.mxu0 0.0
        %1360 = vmatprep.subr.mxu0 0.0
        %1361 = vmatpush1.msra.mxu0 0.0
        %1362 = vmatprep.subr.mxu0 0.0
        %1363 = vmatpush1.msra.mxu0 0.0
        %1364 = vmatprep.subr.mxu0 0.0
        %1365 = vmatpush1.msra.mxu0 0.0
        %1366 = vmatprep.subr.mxu0 0.0
        %1367 = vmatpush1.msra.mxu0 0.0
        %1368 = vmatprep.subr.mxu0 0.0
        %1369 = vmatpush1.msra.mxu0 0.0
        %1370 = vmatprep.subr.mxu0 0.0
        %1371 = vmatpush1.msra.mxu0 0.0
        %1372 = vmatprep.subr.mxu0 0.0
        %1373 = vmatpush1.msra.mxu0 0.0
        %1374 = vmatprep.subr.mxu0 0.0
        %1375 = vmatpush1.msra.mxu0 0.0
        %1376 = vmatprep.subr.mxu0 0.0
        %1377 = vmatpush1.msra.mxu0 0.0
        %1378 = vmatprep.subr.mxu0 0.0
        %1379 = vmatpush1.msra.mxu0 0.0
        %1380 = vmatprep.subr.mxu0 0.0
        %1381 = vmatpush1.msra.mxu0 0.0
        %1382 = vmatprep.subr.mxu0 0.0
        %1383 = vmatpush1.msra.mxu0 0.0
        %1384 = vmatprep.subr.mxu0 0.0
        %1385 = vmatpush1.msra.mxu0 0.0
        %1386 = vmatprep.subr.mxu0 0.0
        %1387 = vmatpush1.msra.mxu0 0.0
        %1388 = vmatprep.subr.mxu0 0.0
        %1389 = vmatpush1.msra.mxu0 0.0
        %1390 = vmatprep.subr.mxu0 0.0
        %1391 = vmatpush1.msra.mxu0 0.0
        %1392 = vmatprep.subr.mxu0 0.0
        %1393 = vmatpush1.msra.mxu0 0.0
        %1394 = vmatprep.subr.mxu0 0.0
        %1395 = vmatpush1.msra.mxu0 0.0
        %1396 = vmatprep.subr.mxu0 0.0
        %1397 = vmatpush1.msra.mxu0 0.0
        %1398 = vmatprep.subr.mxu0 0.0
        %1399 = vmatpush1.msra.mxu0 0.0
        %1400 = vmatprep.subr.mxu0 0.0
        %1401 = vmatpush1.msra.mxu0 0.0
        %1402 = vmatprep.subr.mxu0 0.0
        %1403 = vmatpush1.msra.mxu0 0.0
        %1404 = vmatprep.subr.mxu0 0.0
        %1405 = vmatpush1.msra.mxu0 0.0
        %1406 = vmatprep.subr.mxu0 0.0
        %1407 = vmatpush1.msra.mxu0 0.0
        %1408 = vmatprep.subr.mxu0 0.0
        %1409 = vmatpush1.msra.mxu0 0.0
        %1410 = vmatprep.mubr.f32.mxu0 0.0
        %1411 = vmatmul.mubr.f32.gmra.mrb[0].mxu0 %v831
        %v1412 = vpop.f32.mrb[0].mxu0
        %v1413 = vadd.f32 0.0, %v1412
        %v1414 = vpop.f32.mrb[0].mxu0
        %1415 = vmatprep.mubr.f32.mxu0 0.0
        %1416 = vmatmul.mubr.f32.gmra.mrb[0].mxu0 %v834
        %v1417 = vpop.f32.mrb[0].mxu0
        %v1418 = vadd.f32 0.0, %v1417
        %v1419 = vpop.f32.mrb[0].mxu0
        %1420 = vdwg.mxu0
        %1421 = vst.msk [vmem:[#allocation2 + $0x60] sm:$0xff] %vm266, %v1413
        %1422 = vst.msk [vmem:[#allocation2 + $0x68] sm:$0xff] %vm266, %v1418
        %1425 = vrot.lane.b32.xlu0 %v813, 96
        %v1426 = vpop.permute.xlu0 %1425
        %1427 = vrot.lane.b32.xlu0 %v818, 96
        %v1428 = vpop.permute.xlu0 %1427
        %1431 = vmatprep.subr.mxu0 0.0
        %1432 = vmatpush1.msra.mxu0 %v1426
        %1433 = vmatprep.subr.mxu0 0.0
        %1434 = vmatpush1.msra.mxu0 %v1428
        %1435 = vmatprep.subr.mxu0 0.0
        %1436 = vmatpush1.msra.mxu0 0.0
        %1437 = vmatprep.subr.mxu0 0.0
        %1438 = vmatpush1.msra.mxu0 0.0
        %1439 = vmatprep.subr.mxu0 0.0
        %1440 = vmatpush1.msra.mxu0 0.0
        %1441 = vmatprep.subr.mxu0 0.0
        %1442 = vmatpush1.msra.mxu0 0.0
        %1443 = vmatprep.subr.mxu0 0.0
        %1444 = vmatpush1.msra.mxu0 0.0
        %1445 = vmatprep.subr.mxu0 0.0
        %1446 = vmatpush1.msra.mxu0 0.0
        %1447 = vmatprep.subr.mxu0 0.0
        %1448 = vmatpush1.msra.mxu0 0.0
        %1449 = vmatprep.subr.mxu0 0.0
        %1450 = vmatpush1.msra.mxu0 0.0
        %1451 = vmatprep.subr.mxu0 0.0
        %1452 = vmatpush1.msra.mxu0 0.0
        %1453 = vmatprep.subr.mxu0 0.0
        %1454 = vmatpush1.msra.mxu0 0.0
        %1455 = vmatprep.subr.mxu0 0.0
        %1456 = vmatpush1.msra.mxu0 0.0
        %1457 = vmatprep.subr.mxu0 0.0
        %1458 = vmatpush1.msra.mxu0 0.0
        %1459 = vmatprep.subr.mxu0 0.0
        %1460 = vmatpush1.msra.mxu0 0.0
        %1461 = vmatprep.subr.mxu0 0.0
        %1462 = vmatpush1.msra.mxu0 0.0
        %1463 = vmatprep.subr.mxu0 0.0
        %1464 = vmatpush1.msra.mxu0 0.0
        %1465 = vmatprep.subr.mxu0 0.0
        %1466 = vmatpush1.msra.mxu0 0.0
        %1467 = vmatprep.subr.mxu0 0.0
        %1468 = vmatpush1.msra.mxu0 0.0
        %1469 = vmatprep.subr.mxu0 0.0
        %1470 = vmatpush1.msra.mxu0 0.0
        %1471 = vmatprep.subr.mxu0 0.0
        %1472 = vmatpush1.msra.mxu0 0.0
        %1473 = vmatprep.subr.mxu0 0.0
        %1474 = vmatpush1.msra.mxu0 0.0
        %1475 = vmatprep.subr.mxu0 0.0
        %1476 = vmatpush1.msra.mxu0 0.0
        %1477 = vmatprep.subr.mxu0 0.0
        %1478 = vmatpush1.msra.mxu0 0.0
        %1479 = vmatprep.subr.mxu0 0.0
        %1480 = vmatpush1.msra.mxu0 0.0
        %1481 = vmatprep.subr.mxu0 0.0
        %1482 = vmatpush1.msra.mxu0 0.0
        %1483 = vmatprep.subr.mxu0 0.0
        %1484 = vmatpush1.msra.mxu0 0.0
        %1485 = vmatprep.subr.mxu0 0.0
        %1486 = vmatpush1.msra.mxu0 0.0
        %1487 = vmatprep.subr.mxu0 0.0
        %1488 = vmatpush1.msra.mxu0 0.0
        %1489 = vmatprep.subr.mxu0 0.0
        %1490 = vmatpush1.msra.mxu0 0.0
        %1491 = vmatprep.subr.mxu0 0.0
        %1492 = vmatpush1.msra.mxu0 0.0
        %1493 = vmatprep.subr.mxu0 0.0
        %1494 = vmatpush1.msra.mxu0 0.0
        %1495 = vmatprep.mubr.f32.mxu0 0.0
        %1496 = vmatmul.mubr.f32.gmra.mrb[0].mxu0 %v831
        %v1497 = vpop.f32.mrb[0].mxu0
        %v1498 = vadd.f32 0.0, %v1497
        %v1499 = vpop.f32.mrb[0].mxu0
        %1500 = vmatprep.mubr.f32.mxu0 0.0
        %1501 = vmatmul.mubr.f32.gmra.mrb[0].mxu0 %v834
        %v1502 = vpop.f32.mrb[0].mxu0
        %v1503 = vadd.f32 0.0, %v1502
        %v1504 = vpop.f32.mrb[0].mxu0
        %1505 = vdwg.mxu0
        %1506 = vst.msk [vmem:[#allocation2 + $0x70] sm:$0xff] %vm266, %v1498
        %1507 = vst.msk [vmem:[#allocation2 + $0x78] sm:$0xff] %vm266, %v1503
        %v1508 = vld [vmem:[#allocation2] sm:$0xff]
        %v1509 = vld [vmem:[#allocation2 + $0x8] sm:$0xff]
        %v1510 = vld [vmem:[#allocation2 + $0x10] sm:$0xff]
        %v1511 = vld [vmem:[#allocation2 + $0x18] sm:$0xff]
        %v1512 = vld [vmem:[#allocation2 + $0x20] sm:$0xff]
        %v1513 = vld [vmem:[#allocation2 + $0x28] sm:$0xff]
        %v1514 = vld [vmem:[#allocation2 + $0x30] sm:$0xff]
        %v1515 = vld [vmem:[#allocation2 + $0x38] sm:$0xff]
        %v1516 = vld [vmem:[#allocation2 + $0x40] sm:$0xff]
        %v1517 = vld [vmem:[#allocation2 + $0x48] sm:$0xff]
        %v1518 = vld [vmem:[#allocation2 + $0x50] sm:$0xff]
        %v1519 = vld [vmem:[#allocation2 + $0x58] sm:$0xff]
        %v1520 = vld [vmem:[#allocation2 + $0x60] sm:$0xff]
        %v1521 = vld [vmem:[#allocation2 + $0x68] sm:$0xff]
        %v1522 = vld [vmem:[#allocation2 + $0x70] sm:$0xff]
        %v1523 = vld [vmem:[#allocation2 + $0x78] sm:$0xff]
        %v1524 = vadd.f32 %v743, %v1508
        %v1525 = vadd.f32 %v748, %v1509
        %v1526 = vadd.f32 %v753, %v1510
        %v1527 = vadd.f32 %v758, %v1511
        %v1528 = vadd.f32 %v763, %v1512
        %v1529 = vadd.f32 %v768, %v1513
        %v1530 = vadd.f32 %v773, %v1514
        %v1531 = vadd.f32 %v778, %v1515
        %v1532 = vadd.f32 %v783, %v1516
        %v1533 = vadd.f32 %v788, %v1517
        %v1534 = vadd.f32 %v793, %v1518
        %v1535 = vadd.f32 %v798, %v1519
        %v1536 = vadd.f32 %v803, %v1520
        %v1537 = vadd.f32 %v808, %v1521
        %v1538 = vadd.f32 %v813, %v1522
        %v1539 = vadd.f32 %v818, %v1523
        %v1540 = vlaneseq
        %v1541 = vshrl.u32 %v1540, 7
        %v1542 = vsub.s32 1, %v1541
        %v1543 = vrot.slane %v244, %v1542
        %v1544 = vadd.f32 %v1524, %v1543
        %v1545 = vadd.f32 %v1525, %v1543
        %v1546 = vadd.f32 %v1526, %v1543
        %v1547 = vadd.f32 %v1527, %v1543
        %v1548 = vadd.f32 %v1528, %v1543
        %v1549 = vadd.f32 %v1529, %v1543
        %v1550 = vadd.f32 %v1530, %v1543
        %v1551 = vadd.f32 %v1531, %v1543
        %v1552 = vadd.f32 %v1532, %v1543
        %v1553 = vadd.f32 %v1533, %v1543
        %v1554 = vadd.f32 %v1534, %v1543
        %v1555 = vadd.f32 %v1535, %v1543
        %v1556 = vadd.f32 %v1536, %v1543
        %v1557 = vadd.f32 %v1537, %v1543
        %v1558 = vadd.f32 %v1538, %v1543
        %v1559 = vadd.f32 %v1539, %v1543
        %v1560 = vadd.f32 %v1544, %v226
        %v1561 = vadd.f32 %v1545, %v227
        %v1562 = vadd.f32 %v1546, %v228
        %v1563 = vadd.f32 %v1547, %v229
        %v1564 = vadd.f32 %v1548, %v230
        %v1565 = vadd.f32 %v1549, %v231
        %v1566 = vadd.f32 %v1550, %v232
        %v1567 = vadd.f32 %v1551, %v233
        %v1568 = vadd.f32 %v1552, %v234
        %v1569 = vadd.f32 %v1553, %v235
        %v1570 = vadd.f32 %v1554, %v236
        %v1571 = vadd.f32 %v1555, %v237
        %v1572 = vadd.f32 %v1556, %v238
        %v1573 = vadd.f32 %v1557, %v239
        %v1574 = vadd.f32 %v1558, %v240
        %v1575 = vadd.f32 %v1559, %v241
        %v1576 = vsel %vm266, %v1560, 0.0
        %1577 = vadd.xlane.f32.xlu0 %v1576
        %v1578 = vpop.xlane.xlu0 %1577
        %v1579 = vsel %vm266, %v1561, 0.0
        %1580 = vadd.xlane.f32.xlu0 %v1579
        %v1581 = vpop.xlane.xlu0 %1580
        %v1582 = vsel %vm266, %v1562, 0.0
        %1583 = vadd.xlane.f32.xlu0 %v1582
        %v1584 = vpop.xlane.xlu0 %1583
        %v1585 = vsel %vm266, %v1563, 0.0
        %1586 = vadd.xlane.f32.xlu0 %v1585
        %v1587 = vpop.xlane.xlu0 %1586
        %v1588 = vsel %vm266, %v1564, 0.0
        %1589 = vadd.xlane.f32.xlu0 %v1588
        %v1590 = vpop.xlane.xlu0 %1589
        %v1591 = vsel %vm266, %v1565, 0.0
        %1592 = vadd.xlane.f32.xlu0 %v1591
        %v1593 = vpop.xlane.xlu0 %1592
        %v1594 = vsel %vm266, %v1566, 0.0
        %1595 = vadd.xlane.f32.xlu0 %v1594
        %v1596 = vpop.xlane.xlu0 %1595
        %v1597 = vsel %vm266, %v1567, 0.0
        %1598 = vadd.xlane.f32.xlu0 %v1597
        %v1599 = vpop.xlane.xlu0 %1598
        %v1600 = vsel %vm266, %v1568, 0.0
        %1601 = vadd.xlane.f32.xlu0 %v1600
        %v1602 = vpop.xlane.xlu0 %1601
        %v1603 = vsel %vm266, %v1569, 0.0
        %1604 = vadd.xlane.f32.xlu0 %v1603
        %v1605 = vpop.xlane.xlu0 %1604
        %v1606 = vsel %vm266, %v1570, 0.0
        %1607 = vadd.xlane.f32.xlu0 %v1606
        %v1608 = vpop.xlane.xlu0 %1607
        %v1609 = vsel %vm266, %v1571, 0.0
        %1610 = vadd.xlane.f32.xlu0 %v1609
        %v1611 = vpop.xlane.xlu0 %1610
        %v1612 = vsel %vm266, %v1572, 0.0
        %1613 = vadd.xlane.f32.xlu0 %v1612
        %v1614 = vpop.xlane.xlu0 %1613
        %v1615 = vsel %vm266, %v1573, 0.0
        %1616 = vadd.xlane.f32.xlu0 %v1615
        %v1617 = vpop.xlane.xlu0 %1616
        %v1618 = vsel %vm266, %v1574, 0.0
        %1619 = vadd.xlane.f32.xlu0 %v1618
        %v1620 = vpop.xlane.xlu0 %1619
        %v1621 = vsel %vm266, %v1575, 0.0
        %1622 = vadd.xlane.f32.xlu0 %v1621
        %v1623 = vpop.xlane.xlu0 %1622
        %v1624 = vrcp.pop 32.0
        %v1625 = vmul.f32 %v1578, %v1624
        %v1626 = vmul.f32 %v1581, %v1624
        %v1627 = vmul.f32 %v1584, %v1624
        %v1628 = vmul.f32 %v1587, %v1624
        %v1629 = vmul.f32 %v1590, %v1624
        %v1630 = vmul.f32 %v1593, %v1624
        %v1631 = vmul.f32 %v1596, %v1624
        %v1632 = vmul.f32 %v1599, %v1624
        %v1633 = vmul.f32 %v1602, %v1624
        %v1634 = vmul.f32 %v1605, %v1624
        %v1635 = vmul.f32 %v1608, %v1624
        %v1636 = vmul.f32 %v1611, %v1624
        %v1637 = vmul.f32 %v1614, %v1624
        %v1638 = vmul.f32 %v1617, %v1624
        %v1639 = vmul.f32 %v1620, %v1624
        %v1640 = vmul.f32 %v1623, %v1624
        %v1641 = vsub.f32 %v1560, %v1625
        %v1642 = vsub.f32 %v1561, %v1626
        %v1643 = vsub.f32 %v1562, %v1627
        %v1644 = vsub.f32 %v1563, %v1628
        %v1645 = vsub.f32 %v1564, %v1629
        %v1646 = vsub.f32 %v1565, %v1630
        %v1647 = vsub.f32 %v1566, %v1631
        %v1648 = vsub.f32 %v1567, %v1632
        %v1649 = vsub.f32 %v1568, %v1633
        %v1650 = vsub.f32 %v1569, %v1634
        %v1651 = vsub.f32 %v1570, %v1635
        %v1652 = vsub.f32 %v1571, %v1636
        %v1653 = vsub.f32 %v1572, %v1637
        %v1654 = vsub.f32 %v1573, %v1638
        %v1655 = vsub.f32 %v1574, %v1639
        %v1656 = vsub.f32 %v1575, %v1640
        %v1657 = vmul.f32 %v1641, %v1641
        %v1658 = vmul.f32 %v1642, %v1642
        %v1659 = vmul.f32 %v1643, %v1643
        %v1660 = vmul.f32 %v1644, %v1644
        %v1661 = vmul.f32 %v1645, %v1645
        %v1662 = vmul.f32 %v1646, %v1646
        %v1663 = vmul.f32 %v1647, %v1647
        %v1664 = vmul.f32 %v1648, %v1648
        %v1665 = vmul.f32 %v1649, %v1649
        %v1666 = vmul.f32 %v1650, %v1650
        %v1667 = vmul.f32 %v1651, %v1651
        %v1668 = vmul.f32 %v1652, %v1652
        %v1669 = vmul.f32 %v1653, %v1653
        %v1670 = vmul.f32 %v1654, %v1654
        %v1671 = vmul.f32 %v1655, %v1655
        %v1672 = vmul.f32 %v1656, %v1656
        %v1673 = vsel %vm266, %v1657, 0.0
        %1674 = vadd.xlane.f32.xlu0 %v1673
        %v1675 = vpop.xlane.xlu0 %1674
        %v1676 = vsel %vm266, %v1658, 0.0
        %1677 = vadd.xlane.f32.xlu0 %v1676
        %v1678 = vpop.xlane.xlu0 %1677
        %v1679 = vsel %vm266, %v1659, 0.0
        %1680 = vadd.xlane.f32.xlu0 %v1679
        %v1681 = vpop.xlane.xlu0 %1680
        %v1682 = vsel %vm266, %v1660, 0.0
        %1683 = vadd.xlane.f32.xlu0 %v1682
        %v1684 = vpop.xlane.xlu0 %1683
        %v1685 = vsel %vm266, %v1661, 0.0
        %1686 = vadd.xlane.f32.xlu0 %v1685
        %v1687 = vpop.xlane.xlu0 %1686
        %v1688 = vsel %vm266, %v1662, 0.0
        %1689 = vadd.xlane.f32.xlu0 %v1688
        %v1690 = vpop.xlane.xlu0 %1689
        %v1691 = vsel %vm266, %v1663, 0.0
        %1692 = vadd.xlane.f32.xlu0 %v1691
        %v1693 = vpop.xlane.xlu0 %1692
        %v1694 = vsel %vm266, %v1664, 0.0
        %1695 = vadd.xlane.f32.xlu0 %v1694
        %v1696 = vpop.xlane.xlu0 %1695
        %v1697 = vsel %vm266, %v1665, 0.0
        %1698 = vadd.xlane.f32.xlu0 %v1697
        %v1699 = vpop.xlane.xlu0 %1698
        %v1700 = vsel %vm266, %v1666, 0.0
        %1701 = vadd.xlane.f32.xlu0 %v1700
        %v1702 = vpop.xlane.xlu0 %1701
        %v1703 = vsel %vm266, %v1667, 0.0
        %1704 = vadd.xlane.f32.xlu0 %v1703
        %v1705 = vpop.xlane.xlu0 %1704
        %v1706 = vsel %vm266, %v1668, 0.0
        %1707 = vadd.xlane.f32.xlu0 %v1706
        %v1708 = vpop.xlane.xlu0 %1707
        %v1709 = vsel %vm266, %v1669, 0.0
        %1710 = vadd.xlane.f32.xlu0 %v1709
        %v1711 = vpop.xlane.xlu0 %1710
        %v1712 = vsel %vm266, %v1670, 0.0
        %1713 = vadd.xlane.f32.xlu0 %v1712
        %v1714 = vpop.xlane.xlu0 %1713
        %v1715 = vsel %vm266, %v1671, 0.0
        %1716 = vadd.xlane.f32.xlu0 %v1715
        %v1717 = vpop.xlane.xlu0 %1716
        %v1718 = vsel %vm266, %v1672, 0.0
        %1719 = vadd.xlane.f32.xlu0 %v1718
        %v1720 = vpop.xlane.xlu0 %1719
        %v1721 = vmul.f32 %v1675, %v1624
        %v1722 = vmul.f32 %v1678, %v1624
        %v1723 = vmul.f32 %v1681, %v1624
        %v1724 = vmul.f32 %v1684, %v1624
        %v1725 = vmul.f32 %v1687, %v1624
        %v1726 = vmul.f32 %v1690, %v1624
        %v1727 = vmul.f32 %v1693, %v1624
        %v1728 = vmul.f32 %v1696, %v1624
        %v1729 = vmul.f32 %v1699, %v1624
        %v1730 = vmul.f32 %v1702, %v1624
        %v1731 = vmul.f32 %v1705, %v1624
        %v1732 = vmul.f32 %v1708, %v1624
        %v1733 = vmul.f32 %v1711, %v1624
        %v1734 = vmul.f32 %v1714, %v1624
        %v1735 = vmul.f32 %v1717, %v1624
        %v1736 = vmul.f32 %v1720, %v1624
        %v1737 = vadd.f32 %v1721, 1e-05
        %v1738 = vadd.f32 %v1722, 1e-05
        %v1739 = vadd.f32 %v1723, 1e-05
        %v1740 = vadd.f32 %v1724, 1e-05
        %v1741 = vadd.f32 %v1725, 1e-05
        %v1742 = vadd.f32 %v1726, 1e-05
        %v1743 = vadd.f32 %v1727, 1e-05
        %v1744 = vadd.f32 %v1728, 1e-05
        %v1745 = vadd.f32 %v1729, 1e-05
        %v1746 = vadd.f32 %v1730, 1e-05
        %v1747 = vadd.f32 %v1731, 1e-05
        %v1748 = vadd.f32 %v1732, 1e-05
        %v1749 = vadd.f32 %v1733, 1e-05
        %v1750 = vadd.f32 %v1734, 1e-05
        %v1751 = vadd.f32 %v1735, 1e-05
        %v1752 = vadd.f32 %v1736, 1e-05
        %v1753 = vrsqrt.pop %v1737
        %v1754 = vrsqrt.pop %v1738
        %v1755 = vrsqrt.pop %v1739
        %v1756 = vrsqrt.pop %v1740
        %v1757 = vrsqrt.pop %v1741
        %v1758 = vrsqrt.pop %v1742
        %v1759 = vrsqrt.pop %v1743
        %v1760 = vrsqrt.pop %v1744
        %v1761 = vrsqrt.pop %v1745
        %v1762 = vrsqrt.pop %v1746
        %v1763 = vrsqrt.pop %v1747
        %v1764 = vrsqrt.pop %v1748
        %v1765 = vrsqrt.pop %v1749
        %v1766 = vrsqrt.pop %v1750
        %v1767 = vrsqrt.pop %v1751
        %v1768 = vrsqrt.pop %v1752
        %v1769 = vmul.f32 %v1641, %v1753
        %v1770 = vmul.f32 %v1642, %v1754
        %v1771 = vmul.f32 %v1643, %v1755
        %v1772 = vmul.f32 %v1644, %v1756
        %v1773 = vmul.f32 %v1645, %v1757
        %v1774 = vmul.f32 %v1646, %v1758
        %v1775 = vmul.f32 %v1647, %v1759
        %v1776 = vmul.f32 %v1648, %v1760
        %v1777 = vmul.f32 %v1649, %v1761
        %v1778 = vmul.f32 %v1650, %v1762
        %v1779 = vmul.f32 %v1651, %v1763
        %v1780 = vmul.f32 %v1652, %v1764
        %v1781 = vmul.f32 %v1653, %v1765
        %v1782 = vmul.f32 %v1654, %v1766
        %v1783 = vmul.f32 %v1655, %v1767
        %v1784 = vmul.f32 %v1656, %v1768
        %v1785 = vlaneseq
        %v1786 = vshrl.u32 %v1785, 7
        %v1787 = vsub.s32 2, %v1786
        %v1788 = vrot.slane %v244, %v1787
        %v1789 = vmul.f32 %v1769, %v1788
        %v1790 = vmul.f32 %v1770, %v1788
        %v1791 = vmul.f32 %v1771, %v1788
        %v1792 = vmul.f32 %v1772, %v1788
        %v1793 = vmul.f32 %v1773, %v1788
        %v1794 = vmul.f32 %v1774, %v1788
        %v1795 = vmul.f32 %v1775, %v1788
        %v1796 = vmul.f32 %v1776, %v1788
        %v1797 = vmul.f32 %v1777, %v1788
        %v1798 = vmul.f32 %v1778, %v1788
        %v1799 = vmul.f32 %v1779, %v1788
        %v1800 = vmul.f32 %v1780, %v1788
        %v1801 = vmul.f32 %v1781, %v1788
        %v1802 = vmul.f32 %v1782, %v1788
        %v1803 = vmul.f32 %v1783, %v1788
        %v1804 = vmul.f32 %v1784, %v1788
        %v1805 = vlaneseq
        %v1806 = vshrl.u32 %v1805, 7
        %v1807 = vsub.s32 3, %v1806
        %v1808 = vrot.slane %v244, %v1807
        %v1809 = vadd.f32 %v1789, %v1808
        %v1810 = vadd.f32 %v1790, %v1808
        %v1811 = vadd.f32 %v1791, %v1808
        %v1812 = vadd.f32 %v1792, %v1808
        %v1813 = vadd.f32 %v1793, %v1808
        %v1814 = vadd.f32 %v1794, %v1808
        %v1815 = vadd.f32 %v1795, %v1808
        %v1816 = vadd.f32 %v1796, %v1808
        %v1817 = vadd.f32 %v1797, %v1808
        %v1818 = vadd.f32 %v1798, %v1808
        %v1819 = vadd.f32 %v1799, %v1808
        %v1820 = vadd.f32 %v1800, %v1808
        %v1821 = vadd.f32 %v1801, %v1808
        %v1822 = vadd.f32 %v1802, %v1808
        %v1823 = vadd.f32 %v1803, %v1808
        %v1824 = vadd.f32 %v1804, %v1808
        %1825 = vst.msk [vmem:[%s218] sm:$0xff] %vm266, %v1809
        %1826 = vst.msk [vmem:[%s218 + $0x8] sm:$0xff] %vm266, %v1810
        %1827 = vst.msk [vmem:[%s218 + $0x10] sm:$0xff] %vm266, %v1811
        %1828 = vst.msk [vmem:[%s218 + $0x18] sm:$0xff] %vm266, %v1812
        %1829 = vst.msk [vmem:[%s218 + $0x20] sm:$0xff] %vm266, %v1813
        %1830 = vst.msk [vmem:[%s218 + $0x28] sm:$0xff] %vm266, %v1814
        %1831 = vst.msk [vmem:[%s218 + $0x30] sm:$0xff] %vm266, %v1815
        %1832 = vst.msk [vmem:[%s218 + $0x38] sm:$0xff] %vm266, %v1816
        %1833 = vst.msk [vmem:[%s218 + $0x40] sm:$0xff] %vm266, %v1817
        %1834 = vst.msk [vmem:[%s218 + $0x48] sm:$0xff] %vm266, %v1818
        %1835 = vst.msk [vmem:[%s218 + $0x50] sm:$0xff] %vm266, %v1819
        %1836 = vst.msk [vmem:[%s218 + $0x58] sm:$0xff] %vm266, %v1820
        %1837 = vst.msk [vmem:[%s218 + $0x60] sm:$0xff] %vm266, %v1821
        %1838 = vst.msk [vmem:[%s218 + $0x68] sm:$0xff] %vm266, %v1822
        %1839 = vst.msk [vmem:[%s218 + $0x70] sm:$0xff] %vm266, %v1823
        %1840 = vst.msk [vmem:[%s218 + $0x78] sm:$0xff] %vm266, %v1824
        %s1841 = sand.u32 %s137, 1
        %s1842 = scalar_lea.sflag [#allocation4], %s1841
        %s1843 = sand.u32 %s137, 1
        %s1844 = smul.addr %s1843, 128
        %s1845 = scalar_lea.vmem [#allocation3], %s1844
        // Predicated region
        $region41: #{stblock_pallas.1} parent=39 // pred_check
          %p1846 = pneg %p147
        $region42: #{stblock_pallas.1} parent=39 // pred_check_branch
          %1848 = sbr.rel (%p1846) target = $region44
        $region43: #{stblock_pallas.1} parent=39 // pred_region
          %s1849 = smul.u32 16, %s19
          %s1851 = ssub.s32 2048, 2048
          %1852 = vsyncadd %s1842, %s1851
          %s1853 = smul.addr %s1849, 128
          %s1854 = scalar_lea.hbm %s5, %s1853
          %s1855 = sshll.u32 %s1845, 4
          %s1856 = int_to_ptr.vmem [resolvable:$true] %s1855
          %1861 = dma.vmem_to_hbm [thread:$0]  %s1856, 2048, %s1854, %s1842, 128, 128, 8
        $region44: #{stblock_pallas.1} parent=39 // pred_fallthru
          _
      $region40: #{stblock_pallas.1} parent=5 // pred_fallthru
        _
      %p1862 = scmp.le.s32.totalorder 2, %s14
      // Predicated region
      $region45: #{stblock_pallas.1} parent=5 // pred_check
        %p1863 = pneg %p1862
      $region46: #{stblock_pallas.1} parent=5 // pred_check_branch
        %1865 = sbr.rel (%p1863) target = $region48
      $region47: #{stblock_pallas.1} parent=5 // pred_region
        %s1866 = ssub.s32 %s14, 2
        // Predicated region
        $region49: #{stblock_pallas.1} parent=47 // pred_check
          %p1867 = pneg %p153
        $region50: #{stblock_pallas.1} parent=47 // pred_check_branch
          %1869 = sbr.rel (%p1867) target = $region52
        $region51: #{stblock_pallas.1} parent=47 // pred_region
          %s1870 = sand.u32 %s138, 1
          %s1871 = scalar_lea.sflag [#allocation4], %s1870
          %s1872 = sand.u32 %s138, 1
          %s1873 = smul.addr %s1872, 128
          %s1874 = scalar_lea.vmem [#allocation3], %s1873
          %1875 = dma.done %s1871, 2048
        $region52: #{stblock_pallas.1} parent=47 // pred_fallthru
          _
      $region48: #{stblock_pallas.1} parent=5 // pred_fallthru
        _
    $region6: #{stblock_pallas.1} parent=1 // loop_footer
      %s18 = sadd.s32 1, %s14
    $region7: #{stblock_pallas.1} parent=1 // loop_footer_branch
      %13 = sbr.rel target = $region3
    $region8: #{stblock_pallas.1} parent=1 // loop_exit
      _
    %1876 = vsyncpa [#allocation4], 1
    %s1877 = scalar_lea.sflag [#allocation4], 1
    %1878 = vsyncpa %s1877, 1

</llo_original>
